<compile_context>
chip_gen: v7x
topology: tpu7x:2x2x1
jax: 0.10.0
libtpu: 0.0.40
codegen_flags: <defaults>
</compile_context>

<pallas_src>
import functools

import jax
import jax.numpy as jnp
from jax.experimental import pallas as pl
from jax.experimental.pallas import tpu as pltpu

BATCHNORM_EPSILON = 1e-5  # params.BATCHNORM_EPSILON


# -----------------------------------------------------------------------------
# Kernel: per-tap MXU accumulation + folded-BN shift + ReLU,
# output stored NCHW-flat (lane-dense along Ho*Wo).
# -----------------------------------------------------------------------------
def _conv_bn_relu_kernel(x_ref, w_ref, shift_ref, out_ref, *, kh, kw, ho, wo):
    # x_ref:     (1, Hp, Wp, C_in)      zero-padded NHWC image tile, bf16
    # w_ref:     (KH*KW, C_in, TCo)     per-tap folded weight slabs, bf16
    # shift_ref: (1, TCo)               beta + scale*(bias - mean), f32
    # out_ref:   (1, TCo, Ho*Wo)        NCHW-flat output tile
    ci = x_ref.shape[-1]
    m = ho * wo
    x = x_ref[0]                                           # (Hp, Wp, C_in) bf16

    # Per-tap accumulation: no (M, K) patch materialization, no zero-pad chunk.
    acc = None
    for i in range(kh):
        for j in range(kw):
            # (ho, wo, ci) -> (m, ci): merges the two leading (sublane) dims,
            # the lane dim (ci) is untouched -> layout-clean reshape.
            x_tap = x[i:i + ho, j:j + wo, :].reshape(m, ci)
            w_tap = w_ref[i * kw + j]                      # (ci, TCo) bf16
            part = jnp.dot(x_tap, w_tap, preferred_element_type=jnp.float32)
            acc = part if acc is None else acc + part      # (m, TCo) f32

    y = jnp.maximum(acc + shift_ref[...], 0.0)             # folded BN + ReLU

    # Only live channels are transposed (TCo == C_out for C_out <= 128, no
    # 128-padding), and the store is lane-dense along M = Ho*Wo: the result is
    # already NCHW-flat, so the wrapper does a free reshape only.
    out_ref[0] = y.T.astype(out_ref.dtype)                 # (TCo, m)


def _vmem_limit_bytes():
    """Generation-aware VMEM limit: ~48 MiB on v7x, ~96 MiB on v5e/v6e."""
    try:
        cap = pltpu.get_tpu_info().vmem_capacity_bytes
    except Exception:
        cap = 64 * 1024 * 1024
    return int(min(100 * 1024 * 1024, cap * 3 // 4))


@functools.partial(jax.jit, static_argnames=("stride", "pad", "out_dtype"))
def conv_bn_relu(x, w, b, gamma, beta, run_mean, run_var, *,
                 stride=1, pad=1, out_dtype=jnp.float32):
    """Fused Conv2d + BatchNorm2d(eval) + ReLU.

    x: (N, C_in, H, W) NCHW float32
    w: (C_out, C_in, KH, KW); b, gamma, beta, run_mean, run_var: (C_out,)
    returns: (N, C_out, Ho, Wo) NCHW, dtype `out_dtype`
    """
    if stride != 1:
        raise NotImplementedError("fused kernel currently supports stride=1")
    n, c_in, h, w_in = x.shape
    c_out, _, kh, kw = w.shape
    hp, wp = h + 2 * pad, w_in + 2 * pad
    ho, wo = hp - kh + 1, wp - kw + 1
    m = ho * wo

    # ---- C_out tiling: no padding for small layers; 256-wide tiles feed the
    # 256x256 MXU on v6e/v7x when divisible (on v5e 128-wide would be enough).
    if c_out <= 128:
        tile_co, co_tiles = c_out, 1
    elif c_out % 256 == 0:
        tile_co, co_tiles = 256, c_out // 256
    elif c_out % 128 == 0:
        tile_co, co_tiles = 128, c_out // 128
    else:
        raise NotImplementedError("C_out > 128 must be a multiple of 128")

    # ---- Fold BatchNorm (+ conv bias): scale into the weight, shift stays.
    scale = gamma / jnp.sqrt(run_var + BATCHNORM_EPSILON)           # (C_out,)
    shift = beta + scale * (b - run_mean)                           # (C_out,)

    # Transpose folded onto the (small) weight operand:
    # (C_out, C_in, KH, KW) -> (KH*KW, C_in, C_out) per-tap slabs, bf16.
    w_taps = (jnp.transpose(w * scale[:, None, None, None], (2, 3, 1, 0))
              .reshape(kh * kw, c_in, c_out).astype(jnp.bfloat16))
    shift2d = shift.reshape(1, c_out).astype(jnp.float32)

    # NCHW f32 -> padded NHWC bf16: one fused XLA relayout (halves the bytes the
    # kernel reads from HBM; C_in lands on the lane axis for the matmul).
    x_nhwc = jnp.pad(jnp.transpose(x, (0, 2, 3, 1)),
                     ((0, 0), (pad, pad), (pad, pad), (0, 0))).astype(jnp.bfloat16)

    kernel = functools.partial(_conv_bn_relu_kernel, kh=kh, kw=kw, ho=ho, wo=wo)

    flops = 2 * n * m * c_out * c_in * kh * kw
    bytes_accessed = (n * hp * wp * c_in * 2
                      + kh * kw * c_in * c_out * 2
                      + n * c_out * m * jnp.dtype(out_dtype).itemsize)

    out_flat = pl.pallas_call(
        kernel,
        out_shape=jax.ShapeDtypeStruct((n, c_out, m), out_dtype),
        grid_spec=pltpu.PrefetchScalarGridSpec(
            num_scalar_prefetch=0,
            grid=(n, co_tiles),
            in_specs=[
                pl.BlockSpec((1, hp, wp, c_in), lambda i, co: (i, 0, 0, 0)),
                pl.BlockSpec((kh * kw, c_in, tile_co), lambda i, co: (0, 0, co)),
                pl.BlockSpec((1, tile_co), lambda i, co: (0, co)),
            ],
            out_specs=pl.BlockSpec((1, tile_co, m), lambda i, co: (i, co, 0)),
        ),
        compiler_params=pltpu.CompilerParams(
            dimension_semantics=("parallel", "parallel"),
            vmem_limit_bytes=_vmem_limit_bytes(),
        ),
        cost_estimate=pl.CostEstimate(flops=flops, transcendentals=0,
                                      bytes_accessed=bytes_accessed),
    )(x_nhwc, w_taps, shift2d)

    # Free contiguous reshape back to NCHW -- no transpose needed.
    return out_flat.reshape(n, c_out, ho, wo)


# -----------------------------------------------------------------------------
# Pure-JAX reference (XLA conv) for the correctness check.
# -----------------------------------------------------------------------------
def conv_bn_relu_ref(x, w, b, gamma, beta, run_mean, run_var, *, stride=1, pad=1):
    y = jax.lax.conv_general_dilated(
        x, w, window_strides=(stride, stride),
        padding=((pad, pad), (pad, pad)),
        dimension_numbers=("NCHW", "OIHW", "NCHW"))
    y = y + b.reshape(1, -1, 1, 1)
    y = (y - run_mean.reshape(1, -1, 1, 1)) / jnp.sqrt(
        run_var.reshape(1, -1, 1, 1) + BATCHNORM_EPSILON)
    y = y * gamma.reshape(1, -1, 1, 1) + beta.reshape(1, -1, 1, 1)
    return jnp.maximum(y, 0.0)


if __name__ == "__main__":
    key = jax.random.PRNGKey(0)
    k_x, k_w, k_b, k_g, k_be, k_m, k_v = jax.random.split(key, 7)

    # Conv2d(in_channels=4, out_channels=8, kernel_size=3, stride=1, padding=1)
    N, C_IN, H, W = 2, 4, 16, 16
    C_OUT, KH, KW = 8, 3, 3

    x = jax.random.normal(k_x, (N, C_IN, H, W), dtype=jnp.float32)
    w = jax.random.normal(k_w, (C_OUT, C_IN, KH, KW), dtype=jnp.float32) * 0.1
    b = jax.random.normal(k_b, (C_OUT,), dtype=jnp.float32) * 0.1
    gamma = 1.0 + 0.1 * jax.random.normal(k_g, (C_OUT,), dtype=jnp.float32)
    beta = 0.1 * jax.random.normal(k_be, (C_OUT,), dtype=jnp.float32)
    run_mean = 0.1 * jax.random.normal(k_m, (C_OUT,), dtype=jnp.float32)
    run_var = jnp.abs(jax.random.normal(k_v, (C_OUT,), dtype=jnp.float32)) + 0.5

    out = conv_bn_relu(x, w, b, gamma, beta, run_mean, run_var)
    out = jax.block_until_ready(out)

    ref = conv_bn_relu_ref(x, w, b, gamma, beta, run_mean, run_var)
    assert out.shape == (N, C_OUT, H, W), out.shape
    # bf16 matmul operands (f32 accumulation) -> slightly looser tolerance.
    assert jnp.allclose(out, ref, rtol=5e-2, atol=5e-2), float(
        jnp.max(jnp.abs(out - ref)))

    print("KERNEL_OK")
</pallas_src>

<mosaic_0001>
module attributes {stable_mosaic.version = 11 : i64} {
  func.func @_conv_bn_relu_kernel(%arg0: i32, %arg1: i32, %arg2: memref<1x18x18x4xbf16, #tpu.memory_space<vmem>>, %arg3: memref<9x4x8xbf16, #tpu.memory_space<vmem>>, %arg4: memref<1x8xf32, #tpu.memory_space<vmem>>, %arg5: memref<1x8x256xf32, #tpu.memory_space<vmem>>) attributes {dimension_semantics = [#tpu.dimension_semantics<parallel>, #tpu.dimension_semantics<parallel>], iteration_bounds = array<i64: 2, 1>, scalar_prefetch = 0 : i64, scratch_operands = 0 : i64, tpu.core_type = #tpu.core_type<tc>, window_params = [{transform_indices = @transform_0, window_bounds = array<i64: 1, 18, 18, 4>}, {transform_indices = @transform_1, window_bounds = array<i64: 9, 4, 8>}, {transform_indices = @transform_2, window_bounds = array<i64: 1, 8>}, {transform_indices = @transform_3, window_bounds = array<i64: 1, 8, 256>}]} {
    %c0 = arith.constant 0 : index
    %c0_0 = arith.constant 0 : index
    %c0_1 = arith.constant 0 : index
    %c0_2 = arith.constant 0 : index
    %0 = vector.load %arg2[%c0, %c0_0, %c0_1, %c0_2] : memref<1x18x18x4xbf16, #tpu.memory_space<vmem>>, vector<1x18x18x4xbf16>
    %1 = vector.shape_cast %0 : vector<1x18x18x4xbf16> to vector<18x18x4xbf16>
    %2 = vector.extract_strided_slice %1 {offsets = [0, 0, 0], sizes = [16, 16, 4], strides = [1, 1, 1]} : vector<18x18x4xbf16> to vector<16x16x4xbf16>
    %3 = vector.shape_cast %2 : vector<16x16x4xbf16> to vector<256x4xbf16>
    %c0_3 = arith.constant 0 : index
    %c0_4 = arith.constant 0 : index
    %c0_5 = arith.constant 0 : index
    %4 = vector.load %arg3[%c0_3, %c0_4, %c0_5] : memref<9x4x8xbf16, #tpu.memory_space<vmem>>, vector<1x4x8xbf16>
    %5 = vector.shape_cast %4 : vector<1x4x8xbf16> to vector<4x8xbf16>
    %cst = arith.constant dense<0.000000e+00> : vector<256x8xf32>
    %6 = tpu.matmul %3, %5, %cst {dimension_numbers = #tpu.dot_dimension_numbers<[1], [0], [0], [1], [0, 0, 1, 1], [], []>} : vector<256x4xbf16>, vector<4x8xbf16>, vector<256x8xf32> -> vector<256x8xf32>
    %7 = vector.extract_strided_slice %1 {offsets = [0, 1, 0], sizes = [16, 16, 4], strides = [1, 1, 1]} : vector<18x18x4xbf16> to vector<16x16x4xbf16>
    %8 = vector.shape_cast %7 : vector<16x16x4xbf16> to vector<256x4xbf16>
    %c1 = arith.constant 1 : index
    %c0_6 = arith.constant 0 : index
    %c0_7 = arith.constant 0 : index
    %9 = vector.load %arg3[%c1, %c0_6, %c0_7] : memref<9x4x8xbf16, #tpu.memory_space<vmem>>, vector<1x4x8xbf16>
    %10 = vector.shape_cast %9 : vector<1x4x8xbf16> to vector<4x8xbf16>
    %cst_8 = arith.constant dense<0.000000e+00> : vector<256x8xf32>
    %11 = tpu.matmul %8, %10, %cst_8 {dimension_numbers = #tpu.dot_dimension_numbers<[1], [0], [0], [1], [0, 0, 1, 1], [], []>} : vector<256x4xbf16>, vector<4x8xbf16>, vector<256x8xf32> -> vector<256x8xf32>
    %12 = arith.addf %6, %11 : vector<256x8xf32>
    %13 = vector.extract_strided_slice %1 {offsets = [0, 2, 0], sizes = [16, 16, 4], strides = [1, 1, 1]} : vector<18x18x4xbf16> to vector<16x16x4xbf16>
    %14 = vector.shape_cast %13 : vector<16x16x4xbf16> to vector<256x4xbf16>
    %c2 = arith.constant 2 : index
    %c0_9 = arith.constant 0 : index
    %c0_10 = arith.constant 0 : index
    %15 = vector.load %arg3[%c2, %c0_9, %c0_10] : memref<9x4x8xbf16, #tpu.memory_space<vmem>>, vector<1x4x8xbf16>
    %16 = vector.shape_cast %15 : vector<1x4x8xbf16> to vector<4x8xbf16>
    %cst_11 = arith.constant dense<0.000000e+00> : vector<256x8xf32>
    %17 = tpu.matmul %14, %16, %cst_11 {dimension_numbers = #tpu.dot_dimension_numbers<[1], [0], [0], [1], [0, 0, 1, 1], [], []>} : vector<256x4xbf16>, vector<4x8xbf16>, vector<256x8xf32> -> vector<256x8xf32>
    %18 = arith.addf %12, %17 : vector<256x8xf32>
    %19 = vector.extract_strided_slice %1 {offsets = [1, 0, 0], sizes = [16, 16, 4], strides = [1, 1, 1]} : vector<18x18x4xbf16> to vector<16x16x4xbf16>
    %20 = vector.shape_cast %19 : vector<16x16x4xbf16> to vector<256x4xbf16>
    %c3 = arith.constant 3 : index
    %c0_12 = arith.constant 0 : index
    %c0_13 = arith.constant 0 : index
    %21 = vector.load %arg3[%c3, %c0_12, %c0_13] : memref<9x4x8xbf16, #tpu.memory_space<vmem>>, vector<1x4x8xbf16>
    %22 = vector.shape_cast %21 : vector<1x4x8xbf16> to vector<4x8xbf16>
    %cst_14 = arith.constant dense<0.000000e+00> : vector<256x8xf32>
    %23 = tpu.matmul %20, %22, %cst_14 {dimension_numbers = #tpu.dot_dimension_numbers<[1], [0], [0], [1], [0, 0, 1, 1], [], []>} : vector<256x4xbf16>, vector<4x8xbf16>, vector<256x8xf32> -> vector<256x8xf32>
    %24 = arith.addf %18, %23 : vector<256x8xf32>
    %25 = vector.extract_strided_slice %1 {offsets = [1, 1, 0], sizes = [16, 16, 4], strides = [1, 1, 1]} : vector<18x18x4xbf16> to vector<16x16x4xbf16>
    %26 = vector.shape_cast %25 : vector<16x16x4xbf16> to vector<256x4xbf16>
    %c4 = arith.constant 4 : index
    %c0_15 = arith.constant 0 : index
    %c0_16 = arith.constant 0 : index
    %27 = vector.load %arg3[%c4, %c0_15, %c0_16] : memref<9x4x8xbf16, #tpu.memory_space<vmem>>, vector<1x4x8xbf16>
    %28 = vector.shape_cast %27 : vector<1x4x8xbf16> to vector<4x8xbf16>
    %cst_17 = arith.constant dense<0.000000e+00> : vector<256x8xf32>
    %29 = tpu.matmul %26, %28, %cst_17 {dimension_numbers = #tpu.dot_dimension_numbers<[1], [0], [0], [1], [0, 0, 1, 1], [], []>} : vector<256x4xbf16>, vector<4x8xbf16>, vector<256x8xf32> -> vector<256x8xf32>
    %30 = arith.addf %24, %29 : vector<256x8xf32>
    %31 = vector.extract_strided_slice %1 {offsets = [1, 2, 0], sizes = [16, 16, 4], strides = [1, 1, 1]} : vector<18x18x4xbf16> to vector<16x16x4xbf16>
    %32 = vector.shape_cast %31 : vector<16x16x4xbf16> to vector<256x4xbf16>
    %c5 = arith.constant 5 : index
    %c0_18 = arith.constant 0 : index
    %c0_19 = arith.constant 0 : index
    %33 = vector.load %arg3[%c5, %c0_18, %c0_19] : memref<9x4x8xbf16, #tpu.memory_space<vmem>>, vector<1x4x8xbf16>
    %34 = vector.shape_cast %33 : vector<1x4x8xbf16> to vector<4x8xbf16>
    %cst_20 = arith.constant dense<0.000000e+00> : vector<256x8xf32>
    %35 = tpu.matmul %32, %34, %cst_20 {dimension_numbers = #tpu.dot_dimension_numbers<[1], [0], [0], [1], [0, 0, 1, 1], [], []>} : vector<256x4xbf16>, vector<4x8xbf16>, vector<256x8xf32> -> vector<256x8xf32>
    %36 = arith.addf %30, %35 : vector<256x8xf32>
    %37 = vector.extract_strided_slice %1 {offsets = [2, 0, 0], sizes = [16, 16, 4], strides = [1, 1, 1]} : vector<18x18x4xbf16> to vector<16x16x4xbf16>
    %38 = vector.shape_cast %37 : vector<16x16x4xbf16> to vector<256x4xbf16>
    %c6 = arith.constant 6 : index
    %c0_21 = arith.constant 0 : index
    %c0_22 = arith.constant 0 : index
    %39 = vector.load %arg3[%c6, %c0_21, %c0_22] : memref<9x4x8xbf16, #tpu.memory_space<vmem>>, vector<1x4x8xbf16>
    %40 = vector.shape_cast %39 : vector<1x4x8xbf16> to vector<4x8xbf16>
    %cst_23 = arith.constant dense<0.000000e+00> : vector<256x8xf32>
    %41 = tpu.matmul %38, %40, %cst_23 {dimension_numbers = #tpu.dot_dimension_numbers<[1], [0], [0], [1], [0, 0, 1, 1], [], []>} : vector<256x4xbf16>, vector<4x8xbf16>, vector<256x8xf32> -> vector<256x8xf32>
    %42 = arith.addf %36, %41 : vector<256x8xf32>
    %43 = vector.extract_strided_slice %1 {offsets = [2, 1, 0], sizes = [16, 16, 4], strides = [1, 1, 1]} : vector<18x18x4xbf16> to vector<16x16x4xbf16>
    %44 = vector.shape_cast %43 : vector<16x16x4xbf16> to vector<256x4xbf16>
    %c7 = arith.constant 7 : index
    %c0_24 = arith.constant 0 : index
    %c0_25 = arith.constant 0 : index
    %45 = vector.load %arg3[%c7, %c0_24, %c0_25] : memref<9x4x8xbf16, #tpu.memory_space<vmem>>, vector<1x4x8xbf16>
    %46 = vector.shape_cast %45 : vector<1x4x8xbf16> to vector<4x8xbf16>
    %cst_26 = arith.constant dense<0.000000e+00> : vector<256x8xf32>
    %47 = tpu.matmul %44, %46, %cst_26 {dimension_numbers = #tpu.dot_dimension_numbers<[1], [0], [0], [1], [0, 0, 1, 1], [], []>} : vector<256x4xbf16>, vector<4x8xbf16>, vector<256x8xf32> -> vector<256x8xf32>
    %48 = arith.addf %42, %47 : vector<256x8xf32>
    %49 = vector.extract_strided_slice %1 {offsets = [2, 2, 0], sizes = [16, 16, 4], strides = [1, 1, 1]} : vector<18x18x4xbf16> to vector<16x16x4xbf16>
    %50 = vector.shape_cast %49 : vector<16x16x4xbf16> to vector<256x4xbf16>
    %c8 = arith.constant 8 : index
    %c0_27 = arith.constant 0 : index
    %c0_28 = arith.constant 0 : index
    %51 = vector.load %arg3[%c8, %c0_27, %c0_28] : memref<9x4x8xbf16, #tpu.memory_space<vmem>>, vector<1x4x8xbf16>
    %52 = vector.shape_cast %51 : vector<1x4x8xbf16> to vector<4x8xbf16>
    %cst_29 = arith.constant dense<0.000000e+00> : vector<256x8xf32>
    %53 = tpu.matmul %50, %52, %cst_29 {dimension_numbers = #tpu.dot_dimension_numbers<[1], [0], [0], [1], [0, 0, 1, 1], [], []>} : vector<256x4xbf16>, vector<4x8xbf16>, vector<256x8xf32> -> vector<256x8xf32>
    %54 = arith.addf %48, %53 : vector<256x8xf32>
    %c0_30 = arith.constant 0 : index
    %c0_31 = arith.constant 0 : index
    %55 = vector.load %arg4[%c0_30, %c0_31] : memref<1x8xf32, #tpu.memory_space<vmem>>, vector<1x8xf32>
    %56 = vector.broadcast %55 : vector<1x8xf32> to vector<256x8xf32>
    %57 = arith.addf %54, %56 : vector<256x8xf32>
    %cst_32 = arith.constant 0.000000e+00 : f32
    %58 = vector.broadcast %cst_32 : f32 to vector<256x8xf32>
    %59 = arith.maximumf %57, %58 : vector<256x8xf32>
    %60 = tpu.transpose %59, [1, 0] : vector<256x8xf32> -> vector<8x256xf32>
    %c0_33 = arith.constant 0 : index
    %c0_34 = arith.constant 0 : index
    %c0_35 = arith.constant 0 : index
    %61 = vector.load %arg5[%c0_33, %c0_34, %c0_35] : memref<1x8x256xf32, #tpu.memory_space<vmem>>, vector<1x8x256xf32>
    %62 = vector.shape_cast %61 : vector<1x8x256xf32> to vector<8x256xf32>
    %63 = vector.shape_cast %60 : vector<8x256xf32> to vector<1x8x256xf32>
    tpu.vector_store %arg5[%c0_33, %c0_34, %c0_35], %63 {strides = array<i32>} : memref<1x8x256xf32, #tpu.memory_space<vmem>>, vector<1x8x256xf32>,
    return
  }
  func.func @transform_0(%arg0: i32, %arg1: i32) -> (i32, i32, i32, i32) {
    %c0_i32 = arith.constant 0 : i32
    %c0_i32_0 = arith.constant 0 : i32
    %c0_i32_1 = arith.constant 0 : i32
    %c0_i32_2 = arith.constant 0 : i32
    return %arg0, %c0_i32, %c0_i32_0, %c0_i32_1 : i32, i32, i32, i32
  }
  func.func @transform_1(%arg0: i32, %arg1: i32) -> (i32, i32, i32) {
    %c0_i32 = arith.constant 0 : i32
    %c0_i32_0 = arith.constant 0 : i32
    %c0_i32_1 = arith.constant 0 : i32
    return %c0_i32, %c0_i32_0, %arg1 : i32, i32, i32
  }
  func.func @transform_2(%arg0: i32, %arg1: i32) -> (i32, i32) {
    %c0_i32 = arith.constant 0 : i32
    %c0_i32_0 = arith.constant 0 : i32
    return %c0_i32, %arg1 : i32, i32
  }
  func.func @transform_3(%arg0: i32, %arg1: i32) -> (i32, i32, i32) {
    %c0_i32 = arith.constant 0 : i32
    %c0_i32_0 = arith.constant 0 : i32
    return %arg0, %arg1, %c0_i32 : i32, i32, i32
  }
}

</mosaic_0001>

<llo_original>
// kernel: conv_bn_relu.1
$region0: #{conv_bn_relu.1}
  #allocation0 [shape = 'u32[]', space=smem, size = 0x4, offset = 0x4, fixed_abs, tag = 'smem constant byte address 0x4 - core index']
  #allocation1 [shape = 'u32[144,128]{1,0:T(1,128)}', space=vmem, size = 0x12000, scoped, tag = 'internal scratch']
  %s0 = inlined_call_operand.vmem [shape: bf16[2,18,18,4], index: 0, kind: input, shape index: {}]
  %s1 = inlined_call_operand.vmem [shape: bf16[9,4,8], index: 1, kind: input, shape index: {}]
  %s2 = inlined_call_operand.vmem [shape: f32[1,8], index: 2, kind: input, shape index: {}]
  %s3 = inlined_call_operand.vmem [shape: f32[2,8,256], index: 3, kind: output, shape index: {}]
  %s4 = sld [smem:[#allocation0]]
  $region45: #{conv_bn_relu.1} parent=0
    _
  %s6 = ssub.s32 1, %s4
  %s7 = scalar_select 0, %s6, %s4
  loop: start=0, step=1, limit=4
  $region2: #{conv_bn_relu.1} parent=0 // loop_pre_header
    _
  $region3: #{conv_bn_relu.1} parent=0 // loop_header
    %s9 = sphi 0, %s13
    %p10 = scmp.ge.s32.totalorder %s9, 4
    %s16 = sphi 0, %s28
    %s17 = sphi 0, %s24
    %s18 = sphi 0, %s16
    %s19 = sphi 0, %s17
    %s20 = sphi 0, %s18
    %s21 = sphi 0, %s19
    %s31 = sphi 0, %s33
    %s34 = sphi 0, %s31
    %s35 = sphi 0, %s34
    %s51 = sphi 0, %s35
    %s57 = sphi 0, %s59
    %s60 = sphi 0, %s57
    %s61 = sphi 0, %s60
    %s77 = sphi 0, %s61
    %s83 = sphi 0, %s85
    %s86 = sphi 0, %s83
    %s87 = sphi 0, %s86
    %s103 = sphi 0, %s87
    %s111 = sphi 0, %s113
    %s114 = sphi 0, %s111
    %s115 = sphi 0, %s114
    %s131 = sphi 0, %s115
  $region4: #{conv_bn_relu.1} parent=0 // loop_header_branch
    %12 = sbr.rel (%p10) target = $region8
  $region5: #{conv_bn_relu.1} parent=0 // loop_body
    %s14 = ssub.s32 %s9, 1
    %s15 = ssub.s32 %s9, 2
    %s22 = sadd.s32 1, %s17
    %p23 = scmp.ge.s32.totalorder %s22, 1
    %s24 = scalar_select %p23, 0, %s22
    %s25 = sadd.s32 1, %s16
    %s26 = scalar_select %p23, %s25, %s16
    %p27 = scmp.ge.s32.totalorder %s26, 2
    %s28 = scalar_select %p27, 0, %s26
    %s29 = ssub.s32 %s16, %s28
    %p30 = scmp.eq.s32.totalorder %s29, 0
    %s32 = sadd.s32 %s31, 1
    %s33 = scalar_select %p30, %s31, %s32
    %p36 = pneg %p30
    %p37 = scmp.eq.s32.totalorder %s9, 1
    %p38 = por %p36, %p37
    %p39 = scmp.ne.s32.totalorder %s31, %s34
    %p40 = scmp.eq.s32.totalorder %s9, 0
    %p41 = por %p39, %p40
    %p42 = scmp.ne.s32.totalorder %s31, %s34
    %p43 = scmp.eq.s32.totalorder %s14, 1
    %p44 = por %p42, %p43
    %p45 = scmp.ne.s32.totalorder %s34, %s35
    %p46 = scmp.eq.s32.totalorder %s14, 0
    %p47 = por %p45, %p46
    %p48 = scmp.ne.s32.totalorder %s34, %s35
    %p49 = scmp.eq.s32.totalorder %s15, 1
    %p50 = por %p48, %p49
    %p52 = scmp.ne.s32.totalorder %s35, %s51
    %p53 = scmp.eq.s32.totalorder %s15, 0
    %p54 = por %p52, %p53
    %s55 = ssub.s32 %s17, %s24
    %p56 = scmp.eq.s32.totalorder %s55, 0
    %s58 = sadd.s32 %s57, 1
    %s59 = scalar_select %p56, %s57, %s58
    %p62 = pneg %p56
    %p63 = scmp.eq.s32.totalorder %s9, 1
    %p64 = por %p62, %p63
    %p65 = scmp.ne.s32.totalorder %s57, %s60
    %p66 = scmp.eq.s32.totalorder %s9, 0
    %p67 = por %p65, %p66
    %p68 = scmp.ne.s32.totalorder %s57, %s60
    %p69 = scmp.eq.s32.totalorder %s14, 1
    %p70 = por %p68, %p69
    %p71 = scmp.ne.s32.totalorder %s60, %s61
    %p72 = scmp.eq.s32.totalorder %s14, 0
    %p73 = por %p71, %p72
    %p74 = scmp.ne.s32.totalorder %s60, %s61
    %p75 = scmp.eq.s32.totalorder %s15, 1
    %p76 = por %p74, %p75
    %p78 = scmp.ne.s32.totalorder %s61, %s77
    %p79 = scmp.eq.s32.totalorder %s15, 0
    %p80 = por %p78, %p79
    %s81 = ssub.s32 %s17, %s24
    %p82 = scmp.eq.s32.totalorder %s81, 0
    %s84 = sadd.s32 %s83, 1
    %s85 = scalar_select %p82, %s83, %s84
    %p88 = pneg %p82
    %p89 = scmp.eq.s32.totalorder %s9, 1
    %p90 = por %p88, %p89
    %p91 = scmp.ne.s32.totalorder %s83, %s86
    %p92 = scmp.eq.s32.totalorder %s9, 0
    %p93 = por %p91, %p92
    %p94 = scmp.ne.s32.totalorder %s83, %s86
    %p95 = scmp.eq.s32.totalorder %s14, 1
    %p96 = por %p94, %p95
    %p97 = scmp.ne.s32.totalorder %s86, %s87
    %p98 = scmp.eq.s32.totalorder %s14, 0
    %p99 = por %p97, %p98
    %p100 = scmp.ne.s32.totalorder %s86, %s87
    %p101 = scmp.eq.s32.totalorder %s15, 1
    %p102 = por %p100, %p101
    %p104 = scmp.ne.s32.totalorder %s87, %s103
    %p105 = scmp.eq.s32.totalorder %s15, 0
    %p106 = por %p104, %p105
    %s107 = ssub.s32 %s16, %s28
    %s108 = ssub.s32 %s17, %s24
    %s109 = sor.u32 %s107, %s108
    %p110 = scmp.eq.s32.totalorder %s109, 0
    %s112 = sadd.s32 %s111, 1
    %s113 = scalar_select %p110, %s111, %s112
    %p116 = pneg %p110
    %p117 = scmp.eq.s32.totalorder %s9, 1
    %p118 = por %p116, %p117
    %p119 = scmp.ne.s32.totalorder %s111, %s114
    %p120 = scmp.eq.s32.totalorder %s9, 0
    %p121 = por %p119, %p120
    %p122 = scmp.ne.s32.totalorder %s111, %s114
    %p123 = scmp.eq.s32.totalorder %s14, 1
    %p124 = por %p122, %p123
    %p125 = scmp.ne.s32.totalorder %s114, %s115
    %p126 = scmp.eq.s32.totalorder %s14, 0
    %p127 = por %p125, %p126
    %p128 = scmp.ne.s32.totalorder %s114, %s115
    %p129 = scmp.eq.s32.totalorder %s15, 1
    %p130 = por %p128, %p129
    %p132 = scmp.ne.s32.totalorder %s115, %s131
    %p133 = scmp.eq.s32.totalorder %s15, 0
    %p134 = por %p132, %p133
    %p135 = scmp.le.s32.totalorder 1, %s9
    %p136 = scmp.lt.s32.totalorder %s9, 3
    %p137 = pnand %p135, %p136
    %p138 = pneg %p137
    // Predicated region
    $region9: #{conv_bn_relu.1} parent=5 // pred_check
      _
    $region10: #{conv_bn_relu.1} parent=5 // pred_check_branch
      %140 = sbr.rel (%p137) target = $region12
    $region11: #{conv_bn_relu.1} parent=5 // pred_region
      %s141 = ssub.s32 %s9, 1
      // Predicated region
      $region13: #{conv_bn_relu.1} parent=11 // pred_check
        %p142 = pneg %p73
      $region14: #{conv_bn_relu.1} parent=11 // pred_check_branch
        %144 = sbr.rel (%p142) target = $region16
      $region15: #{conv_bn_relu.1} parent=11 // pred_region
        %p145 = scmp.lt.s32.totalorder %s19, 0
        %s146 = scalar_select %p145, %s19, 0
        %s147 = smul.addr %s146, 2
        %s148 = scalar_lea.vmem %s1, %s147
      $region16: #{conv_bn_relu.1} parent=11 // pred_fallthru
        _
      // Predicated region
      $region17: #{conv_bn_relu.1} parent=11 // pred_check
        %p149 = pneg %p99
      $region18: #{conv_bn_relu.1} parent=11 // pred_check_branch
        %151 = sbr.rel (%p149) target = $region20
      $region19: #{conv_bn_relu.1} parent=11 // pred_region
        %p152 = scmp.lt.s32.totalorder %s19, 0
        %s153 = scalar_select %p152, %s19, 0
        %s154 = scalar_lea.vmem %s2, %s153
      $region20: #{conv_bn_relu.1} parent=11 // pred_fallthru
        _
    $region12: #{conv_bn_relu.1} parent=5 // pred_fallthru
      _
    %p155 = scmp.lt.s32.totalorder %s9, 2
    // Predicated region
    $region21: #{conv_bn_relu.1} parent=5 // pred_check
      %p156 = pneg %p155
    $region22: #{conv_bn_relu.1} parent=5 // pred_check_branch
      %158 = sbr.rel (%p156) target = $region24
    $region23: #{conv_bn_relu.1} parent=5 // pred_region
      // Predicated region
      $region25: #{conv_bn_relu.1} parent=23 // pred_check
        %p159 = pneg %p41
      $region26: #{conv_bn_relu.1} parent=23 // pred_check_branch
        %161 = sbr.rel (%p159) target = $region28
      $region27: #{conv_bn_relu.1} parent=23 // pred_region
        %p162 = scmp.lt.s32.totalorder %s16, 1
        %s163 = scalar_select %p162, %s16, 1
        %s164 = smul.addr %s163, 54
        %s165 = smul.addr %s164, 4
        %s166 = scalar_lea.vmem %s0, %s165
      $region28: #{conv_bn_relu.1} parent=23 // pred_fallthru
        _
    $region24: #{conv_bn_relu.1} parent=5 // pred_fallthru
      _
    %p167 = scmp.le.s32.totalorder 1, %s9
    %p168 = scmp.lt.s32.totalorder %s9, 3
    %p169 = pnand %p167, %p168
    %p170 = pneg %p169
    // Predicated region
    $region29: #{conv_bn_relu.1} parent=5 // pred_check
      _
    $region30: #{conv_bn_relu.1} parent=5 // pred_check_branch
      %172 = sbr.rel (%p169) target = $region32
    $region31: #{conv_bn_relu.1} parent=5 // pred_region
      %s173 = ssub.s32 %s9, 1
      %p174 = scmp.lt.s32.totalorder %s18, 1
      %s175 = scalar_select %p174, %s18, 1
      %s176 = smul.addr %s175, 54
      %s177 = smul.addr %s176, 4
      %s178 = scalar_lea.vmem %s0, %s177
      %p179 = pneg %p47
      %p180 = pneg %p44
      %p181 = scmp.lt.s32.totalorder %s19, 0
      %s182 = scalar_select %p181, %s19, 0
      %s183 = smul.addr %s182, 2
      %s184 = scalar_lea.vmem %s1, %s183
      %p185 = pneg %p73
      %p186 = pneg %p70
      %p187 = scmp.lt.s32.totalorder %s19, 0
      %s188 = scalar_select %p187, %s19, 0
      %s189 = scalar_lea.vmem %s2, %s188
      %p190 = pneg %p99
      %p191 = pneg %p96
      %p192 = pneg %p127
      %p193 = pneg %p124
      %p194 = scmp.lt.s32.totalorder %s18, 1
      %s195 = scalar_select %p194, %s18, 1
      %p196 = scmp.lt.s32.totalorder %s19, 0
      %s197 = scalar_select %p196, %s19, 0
      %s198 = smul.addr %s197, 2
      %s199 = smul.addr %s195, 2
      %s200 = sadd.s32 %s198, %s199
      %s201 = smul.addr %s200, 8
      %s202 = scalar_lea.vmem %s3, %s201
      %p203 = scmp.lt.s32.totalorder %s18, 1
      %s204 = scalar_select %p203, %s18, 1
      %s205 = smul.addr %s204, 54
      %s206 = smul.addr %s205, 4
      %s207 = scalar_lea.vmem %s0, %s206
      %p208 = scmp.lt.s32.totalorder %s19, 0
      %s209 = scalar_select %p208, %s19, 0
      %s210 = smul.addr %s209, 2
      %s211 = scalar_lea.vmem %s1, %s210
      %p212 = scmp.lt.s32.totalorder %s19, 0
      %s213 = scalar_select %p212, %s19, 0
      %s214 = scalar_lea.vmem %s2, %s213
      %p215 = scmp.lt.s32.totalorder %s18, 1
      %s216 = scalar_select %p215, %s18, 1
      %p217 = scmp.lt.s32.totalorder %s19, 0
      %s218 = scalar_select %p217, %s19, 0
      %s219 = smul.addr %s218, 2
      %s220 = smul.addr %s216, 2
      %s221 = sadd.s32 %s219, %s220
      %s222 = smul.addr %s221, 8
      %s223 = scalar_lea.vmem %s3, %s222
      %v225 = vld [vmem:[%s207] sm:$0xf]
      %v226 = vld [vmem:[%s207 + $0x4] sm:$0xf]
      %v227 = vld [vmem:[%s207 + $0x8] sm:$0x1]
      %v228 = vld [vmem:[%s207 + $0xc] sm:$0xf]
      %v229 = vld [vmem:[%s207 + $0x10] sm:$0xf]
      %v230 = vld [vmem:[%s207 + $0x14] sm:$0x1]
      %v231 = vld [vmem:[%s207 + $0x18] sm:$0xf]
      %v232 = vld [vmem:[%s207 + $0x1c] sm:$0xf]
      %v233 = vld [vmem:[%s207 + $0x20] sm:$0x1]
      %v234 = vld [vmem:[%s207 + $0x24] sm:$0xf]
      %v235 = vld [vmem:[%s207 + $0x28] sm:$0xf]
      %v236 = vld [vmem:[%s207 + $0x2c] sm:$0x1]
      %v237 = vld [vmem:[%s207 + $0x30] sm:$0xf]
      %v238 = vld [vmem:[%s207 + $0x34] sm:$0xf]
      %v239 = vld [vmem:[%s207 + $0x38] sm:$0x1]
      %v240 = vld [vmem:[%s207 + $0x3c] sm:$0xf]
      %v241 = vld [vmem:[%s207 + $0x40] sm:$0xf]
      %v242 = vld [vmem:[%s207 + $0x44] sm:$0x1]
      %v243 = vld [vmem:[%s207 + $0x48] sm:$0xf]
      %v244 = vld [vmem:[%s207 + $0x4c] sm:$0xf]
      %v245 = vld [vmem:[%s207 + $0x50] sm:$0x1]
      %v246 = vld [vmem:[%s207 + $0x54] sm:$0xf]
      %v247 = vld [vmem:[%s207 + $0x58] sm:$0xf]
      %v248 = vld [vmem:[%s207 + $0x5c] sm:$0x1]
      %v249 = vld [vmem:[%s207 + $0x60] sm:$0xf]
      %v250 = vld [vmem:[%s207 + $0x64] sm:$0xf]
      %v251 = vld [vmem:[%s207 + $0x68] sm:$0x1]
      %v252 = vld [vmem:[%s207 + $0x6c] sm:$0xf]
      %v253 = vld [vmem:[%s207 + $0x70] sm:$0xf]
      %v254 = vld [vmem:[%s207 + $0x74] sm:$0x1]
      %v255 = vld [vmem:[%s207 + $0x78] sm:$0xf]
      %v256 = vld [vmem:[%s207 + $0x7c] sm:$0xf]
      %v257 = vld [vmem:[%s207 + $0x80] sm:$0x1]
      %v258 = vld [vmem:[%s207 + $0x84] sm:$0xf]
      %v259 = vld [vmem:[%s207 + $0x88] sm:$0xf]
      %v260 = vld [vmem:[%s207 + $0x8c] sm:$0x1]
      %v261 = vld [vmem:[%s207 + $0x90] sm:$0xf]
      %v262 = vld [vmem:[%s207 + $0x94] sm:$0xf]
      %v263 = vld [vmem:[%s207 + $0x98] sm:$0x1]
      %v264 = vld [vmem:[%s207 + $0x9c] sm:$0xf]
      %v265 = vld [vmem:[%s207 + $0xa0] sm:$0xf]
      %v266 = vld [vmem:[%s207 + $0xa4] sm:$0x1]
      %v267 = vld [vmem:[%s207 + $0xa8] sm:$0xf]
      %v268 = vld [vmem:[%s207 + $0xac] sm:$0xf]
      %v269 = vld [vmem:[%s207 + $0xb0] sm:$0x1]
      %v270 = vld [vmem:[%s207 + $0xb4] sm:$0xf]
      %v271 = vld [vmem:[%s207 + $0xb8] sm:$0xf]
      %v272 = vld [vmem:[%s207 + $0xbc] sm:$0x1]
      %v273 = vld [vmem:[%s207 + $0xc0] sm:$0xf]
      %v274 = vld [vmem:[%s207 + $0xc4] sm:$0xf]
      %v275 = vld [vmem:[%s207 + $0xc8] sm:$0x1]
      %v276 = vld [vmem:[%s207 + $0xcc] sm:$0xf]
      %v277 = vld [vmem:[%s207 + $0xd0] sm:$0xf]
      %v278 = vld [vmem:[%s207 + $0xd4] sm:$0x1]
      %v279 = vld [vmem:[%s211] sm:$0x3]
      %vm280 = vsmask.f32 3328
      %vm281 = vsmask.f32 7440
      %vm282 = vmor %vm280, %vm281
      %v284 = vshrl.u32 %v225, 16
      %v286 = vrot.slane %v284, 4
      %v287 = vshll.u32 %v225, 16
      %v289 = vrot.slane %v287, 5
      %v290 = vor.u32 %v286, %v289
      %v291 = vrot.slane %v290, 4
      %v293 = vshll.u32 %v226, 16
      %v295 = vrot.slane %v293, 5
      %v296 = vsel %vm282, %v291, %v295
      %v297 = vshrl.u32 %v226, 16
      %v299 = vrot.slane %v297, 4
      %v300 = vor.u32 %v299, %v295
      %v301 = vrot.slane %v300, 4
      %v303 = vshll.u32 %v227, 16
      %v305 = vrot.slane %v303, 5
      %v306 = vsel %vm282, %v301, %v305
      %v308 = vshrl.u32 %v228, 16
      %v310 = vrot.slane %v308, 4
      %v311 = vshll.u32 %v228, 16
      %v313 = vrot.slane %v311, 5
      %v314 = vor.u32 %v310, %v313
      %v315 = vrot.slane %v314, 4
      %v317 = vshll.u32 %v229, 16
      %v319 = vrot.slane %v317, 5
      %v320 = vsel %vm282, %v315, %v319
      %v321 = vshrl.u32 %v229, 16
      %v323 = vrot.slane %v321, 4
      %v324 = vor.u32 %v323, %v319
      %v325 = vrot.slane %v324, 4
      %v327 = vshll.u32 %v230, 16
      %v329 = vrot.slane %v327, 5
      %v330 = vsel %vm282, %v325, %v329
      %v332 = vshrl.u32 %v231, 16
      %v334 = vrot.slane %v332, 4
      %v335 = vshll.u32 %v231, 16
      %v337 = vrot.slane %v335, 5
      %v338 = vor.u32 %v334, %v337
      %v339 = vrot.slane %v338, 4
      %v341 = vshll.u32 %v232, 16
      %v343 = vrot.slane %v341, 5
      %v344 = vsel %vm282, %v339, %v343
      %v345 = vshrl.u32 %v232, 16
      %v347 = vrot.slane %v345, 4
      %v348 = vor.u32 %v347, %v343
      %v349 = vrot.slane %v348, 4
      %v351 = vshll.u32 %v233, 16
      %v353 = vrot.slane %v351, 5
      %v354 = vsel %vm282, %v349, %v353
      %v356 = vshrl.u32 %v234, 16
      %v358 = vrot.slane %v356, 4
      %v359 = vshll.u32 %v234, 16
      %v361 = vrot.slane %v359, 5
      %v362 = vor.u32 %v358, %v361
      %v363 = vrot.slane %v362, 4
      %v365 = vshll.u32 %v235, 16
      %v367 = vrot.slane %v365, 5
      %v368 = vsel %vm282, %v363, %v367
      %v369 = vshrl.u32 %v235, 16
      %v371 = vrot.slane %v369, 4
      %v372 = vor.u32 %v371, %v367
      %v373 = vrot.slane %v372, 4
      %v375 = vshll.u32 %v236, 16
      %v377 = vrot.slane %v375, 5
      %v378 = vsel %vm282, %v373, %v377
      %v380 = vshrl.u32 %v237, 16
      %v382 = vrot.slane %v380, 4
      %v383 = vshll.u32 %v237, 16
      %v385 = vrot.slane %v383, 5
      %v386 = vor.u32 %v382, %v385
      %v387 = vrot.slane %v386, 4
      %v389 = vshll.u32 %v238, 16
      %v391 = vrot.slane %v389, 5
      %v392 = vsel %vm282, %v387, %v391
      %v393 = vshrl.u32 %v238, 16
      %v395 = vrot.slane %v393, 4
      %v396 = vor.u32 %v395, %v391
      %v397 = vrot.slane %v396, 4
      %v399 = vshll.u32 %v239, 16
      %v401 = vrot.slane %v399, 5
      %v402 = vsel %vm282, %v397, %v401
      %v404 = vshrl.u32 %v240, 16
      %v406 = vrot.slane %v404, 4
      %v407 = vshll.u32 %v240, 16
      %v409 = vrot.slane %v407, 5
      %v410 = vor.u32 %v406, %v409
      %v411 = vrot.slane %v410, 4
      %v413 = vshll.u32 %v241, 16
      %v415 = vrot.slane %v413, 5
      %v416 = vsel %vm282, %v411, %v415
      %v417 = vshrl.u32 %v241, 16
      %v419 = vrot.slane %v417, 4
      %v420 = vor.u32 %v419, %v415
      %v421 = vrot.slane %v420, 4
      %v423 = vshll.u32 %v242, 16
      %v425 = vrot.slane %v423, 5
      %v426 = vsel %vm282, %v421, %v425
      %v428 = vshrl.u32 %v243, 16
      %v430 = vrot.slane %v428, 4
      %v431 = vshll.u32 %v243, 16
      %v433 = vrot.slane %v431, 5
      %v434 = vor.u32 %v430, %v433
      %v435 = vrot.slane %v434, 4
      %v437 = vshll.u32 %v244, 16
      %v439 = vrot.slane %v437, 5
      %v440 = vsel %vm282, %v435, %v439
      %v441 = vshrl.u32 %v244, 16
      %v443 = vrot.slane %v441, 4
      %v444 = vor.u32 %v443, %v439
      %v445 = vrot.slane %v444, 4
      %v447 = vshll.u32 %v245, 16
      %v449 = vrot.slane %v447, 5
      %v450 = vsel %vm282, %v445, %v449
      %v452 = vshrl.u32 %v246, 16
      %v454 = vrot.slane %v452, 4
      %v455 = vshll.u32 %v246, 16
      %v457 = vrot.slane %v455, 5
      %v458 = vor.u32 %v454, %v457
      %v459 = vrot.slane %v458, 4
      %v461 = vshll.u32 %v247, 16
      %v463 = vrot.slane %v461, 5
      %v464 = vsel %vm282, %v459, %v463
      %v465 = vshrl.u32 %v247, 16
      %v467 = vrot.slane %v465, 4
      %v468 = vor.u32 %v467, %v463
      %v469 = vrot.slane %v468, 4
      %v471 = vshll.u32 %v248, 16
      %v473 = vrot.slane %v471, 5
      %v474 = vsel %vm282, %v469, %v473
      %v476 = vshrl.u32 %v249, 16
      %v478 = vrot.slane %v476, 4
      %v479 = vshll.u32 %v249, 16
      %v481 = vrot.slane %v479, 5
      %v482 = vor.u32 %v478, %v481
      %v483 = vrot.slane %v482, 4
      %v485 = vshll.u32 %v250, 16
      %v487 = vrot.slane %v485, 5
      %v488 = vsel %vm282, %v483, %v487
      %v489 = vshrl.u32 %v250, 16
      %v491 = vrot.slane %v489, 4
      %v492 = vor.u32 %v491, %v487
      %v493 = vrot.slane %v492, 4
      %v495 = vshll.u32 %v251, 16
      %v497 = vrot.slane %v495, 5
      %v498 = vsel %vm282, %v493, %v497
      %v500 = vshrl.u32 %v252, 16
      %v502 = vrot.slane %v500, 4
      %v503 = vshll.u32 %v252, 16
      %v505 = vrot.slane %v503, 5
      %v506 = vor.u32 %v502, %v505
      %v507 = vrot.slane %v506, 4
      %v509 = vshll.u32 %v253, 16
      %v511 = vrot.slane %v509, 5
      %v512 = vsel %vm282, %v507, %v511
      %v513 = vshrl.u32 %v253, 16
      %v515 = vrot.slane %v513, 4
      %v516 = vor.u32 %v515, %v511
      %v517 = vrot.slane %v516, 4
      %v519 = vshll.u32 %v254, 16
      %v521 = vrot.slane %v519, 5
      %v522 = vsel %vm282, %v517, %v521
      %v524 = vshrl.u32 %v255, 16
      %v526 = vrot.slane %v524, 4
      %v527 = vshll.u32 %v255, 16
      %v529 = vrot.slane %v527, 5
      %v530 = vor.u32 %v526, %v529
      %v531 = vrot.slane %v530, 4
      %v533 = vshll.u32 %v256, 16
      %v535 = vrot.slane %v533, 5
      %v536 = vsel %vm282, %v531, %v535
      %v537 = vshrl.u32 %v256, 16
      %v539 = vrot.slane %v537, 4
      %v540 = vor.u32 %v539, %v535
      %v541 = vrot.slane %v540, 4
      %v543 = vshll.u32 %v257, 16
      %v545 = vrot.slane %v543, 5
      %v546 = vsel %vm282, %v541, %v545
      %v548 = vshrl.u32 %v258, 16
      %v550 = vrot.slane %v548, 4
      %v551 = vshll.u32 %v258, 16
      %v553 = vrot.slane %v551, 5
      %v554 = vor.u32 %v550, %v553
      %v555 = vrot.slane %v554, 4
      %v557 = vshll.u32 %v259, 16
      %v559 = vrot.slane %v557, 5
      %v560 = vsel %vm282, %v555, %v559
      %v561 = vshrl.u32 %v259, 16
      %v563 = vrot.slane %v561, 4
      %v564 = vor.u32 %v563, %v559
      %v565 = vrot.slane %v564, 4
      %v567 = vshll.u32 %v260, 16
      %v569 = vrot.slane %v567, 5
      %v570 = vsel %vm282, %v565, %v569
      %v572 = vshrl.u32 %v261, 16
      %v574 = vrot.slane %v572, 4
      %v575 = vshll.u32 %v261, 16
      %v577 = vrot.slane %v575, 5
      %v578 = vor.u32 %v574, %v577
      %v579 = vrot.slane %v578, 4
      %v581 = vshll.u32 %v262, 16
      %v583 = vrot.slane %v581, 5
      %v584 = vsel %vm282, %v579, %v583
      %v585 = vshrl.u32 %v262, 16
      %v587 = vrot.slane %v585, 4
      %v588 = vor.u32 %v587, %v583
      %v589 = vrot.slane %v588, 4
      %v591 = vshll.u32 %v263, 16
      %v593 = vrot.slane %v591, 5
      %v594 = vsel %vm282, %v589, %v593
      %v596 = vshrl.u32 %v264, 16
      %v598 = vrot.slane %v596, 4
      %v599 = vshll.u32 %v264, 16
      %v601 = vrot.slane %v599, 5
      %v602 = vor.u32 %v598, %v601
      %v603 = vrot.slane %v602, 4
      %v605 = vshll.u32 %v265, 16
      %v607 = vrot.slane %v605, 5
      %v608 = vsel %vm282, %v603, %v607
      %v609 = vshrl.u32 %v265, 16
      %v611 = vrot.slane %v609, 4
      %v612 = vor.u32 %v611, %v607
      %v613 = vrot.slane %v612, 4
      %v615 = vshll.u32 %v266, 16
      %v617 = vrot.slane %v615, 5
      %v618 = vsel %vm282, %v613, %v617
      %v620 = vshrl.u32 %v267, 16
      %v622 = vrot.slane %v620, 4
      %v623 = vshll.u32 %v267, 16
      %v625 = vrot.slane %v623, 5
      %v626 = vor.u32 %v622, %v625
      %v627 = vrot.slane %v626, 4
      %v629 = vshll.u32 %v268, 16
      %v631 = vrot.slane %v629, 5
      %v632 = vsel %vm282, %v627, %v631
      %v633 = vshrl.u32 %v268, 16
      %v635 = vrot.slane %v633, 4
      %v636 = vor.u32 %v635, %v631
      %v637 = vrot.slane %v636, 4
      %v639 = vshll.u32 %v269, 16
      %v641 = vrot.slane %v639, 5
      %v642 = vsel %vm282, %v637, %v641
      %v644 = vshrl.u32 %v270, 16
      %v646 = vrot.slane %v644, 4
      %v647 = vshll.u32 %v270, 16
      %v649 = vrot.slane %v647, 5
      %v650 = vor.u32 %v646, %v649
      %v651 = vrot.slane %v650, 4
      %v653 = vshll.u32 %v271, 16
      %v655 = vrot.slane %v653, 5
      %v656 = vsel %vm282, %v651, %v655
      %v657 = vshrl.u32 %v271, 16
      %v659 = vrot.slane %v657, 4
      %v660 = vor.u32 %v659, %v655
      %v661 = vrot.slane %v660, 4
      %v663 = vshll.u32 %v272, 16
      %v665 = vrot.slane %v663, 5
      %v666 = vsel %vm282, %v661, %v665
      %s667 = scalar_lea.vmem %s211, 2
      %v668 = vld [vmem:[%s667] sm:$0x3]
      %v669 = vunpack.c.l.b16 %v296
      %v670 = vunpack.c.l.b16 %v306
      %v671 = vunpack.c.l.b16 %v320
      %v672 = vunpack.c.l.b16 %v330
      %v673 = vunpack.c.l.b16 %v344
      %v674 = vunpack.c.l.b16 %v354
      %v675 = vunpack.c.l.b16 %v368
      %v676 = vunpack.c.l.b16 %v378
      %v677 = vunpack.c.l.b16 %v392
      %v678 = vunpack.c.l.b16 %v402
      %v679 = vunpack.c.l.b16 %v416
      %v680 = vunpack.c.l.b16 %v426
      %v681 = vunpack.c.l.b16 %v440
      %v682 = vunpack.c.l.b16 %v450
      %v683 = vunpack.c.l.b16 %v464
      %v684 = vunpack.c.l.b16 %v474
      %v685 = vunpack.c.l.b16 %v488
      %v686 = vunpack.c.l.b16 %v498
      %v687 = vunpack.c.l.b16 %v512
      %v688 = vunpack.c.l.b16 %v522
      %v689 = vunpack.c.l.b16 %v536
      %v690 = vunpack.c.l.b16 %v546
      %v691 = vunpack.c.l.b16 %v560
      %v692 = vunpack.c.l.b16 %v570
      %v693 = vunpack.c.l.b16 %v584
      %v694 = vunpack.c.l.b16 %v594
      %v695 = vunpack.c.l.b16 %v608
      %v696 = vunpack.c.l.b16 %v618
      %v697 = vunpack.c.l.b16 %v632
      %v698 = vunpack.c.l.b16 %v642
      %v699 = vunpack.c.l.b16 %v656
      %v700 = vunpack.c.l.b16 %v666
      %v701 = vpack.c.b16 %v670, %v669
      %v702 = vpack.c.b16 %v672, %v671
      %v703 = vpack.c.b16 %v674, %v673
      %v704 = vpack.c.b16 %v676, %v675
      %v705 = vpack.c.b16 %v678, %v677
      %v706 = vpack.c.b16 %v680, %v679
      %v707 = vpack.c.b16 %v682, %v681
      %v708 = vpack.c.b16 %v684, %v683
      %v709 = vpack.c.b16 %v686, %v685
      %v710 = vpack.c.b16 %v688, %v687
      %v711 = vpack.c.b16 %v690, %v689
      %v712 = vpack.c.b16 %v692, %v691
      %v713 = vpack.c.b16 %v694, %v693
      %v714 = vpack.c.b16 %v696, %v695
      %v715 = vpack.c.b16 %v698, %v697
      %v716 = vpack.c.b16 %v700, %v699
      %vm717 = vcmask 31744
      %v719 = vsel %vm717, %v701, 0
      %v722 = vsel %vm717, %v702, 0
      %v725 = vsel %vm717, %v703, 0
      %v728 = vsel %vm717, %v704, 0
      %v731 = vsel %vm717, %v705, 0
      %v734 = vsel %vm717, %v706, 0
      %v737 = vsel %vm717, %v707, 0
      %v740 = vsel %vm717, %v708, 0
      %v743 = vsel %vm717, %v709, 0
      %v746 = vsel %vm717, %v710, 0
      %v749 = vsel %vm717, %v711, 0
      %v752 = vsel %vm717, %v712, 0
      %v755 = vsel %vm717, %v713, 0
      %v758 = vsel %vm717, %v714, 0
      %v761 = vsel %vm717, %v715, 0
      %v764 = vsel %vm717, %v716, 0
      %vm766 = vcmask 1041408
      %v768 = vsel %vm766, %v668, 0
      %770 = vmatprep.subr.bf16.mxu0 0
      %771 = vmatpush1.bf16.msra.mxu0 %v768
      %772 = vmatprep.subr.bf16.mxu0 0
      %773 = vmatpush1.bf16.msra.mxu0 0
      %774 = vmatprep.subr.bf16.mxu0 0
      %775 = vmatpush1.bf16.msra.mxu0 0
      %776 = vmatprep.subr.bf16.mxu0 0
      %777 = vmatpush1.bf16.msra.mxu0 0
      %778 = vmatprep.subr.bf16.mxu0 0
      %779 = vmatpush1.bf16.msra.mxu0 0
      %780 = vmatprep.subr.bf16.mxu0 0
      %781 = vmatpush1.bf16.msra.mxu0 0
      %782 = vmatprep.subr.bf16.mxu0 0
      %783 = vmatpush1.bf16.msra.mxu0 0
      %784 = vmatprep.subr.bf16.mxu0 0
      %785 = vmatpush1.bf16.msra.mxu0 0
      %786 = vmatprep.subr.bf16.mxu0 0
      %787 = vmatpush1.bf16.msra.mxu0 0
      %788 = vmatprep.subr.bf16.mxu0 0
      %789 = vmatpush1.bf16.msra.mxu0 0
      %790 = vmatprep.subr.bf16.mxu0 0
      %791 = vmatpush1.bf16.msra.mxu0 0
      %792 = vmatprep.subr.bf16.mxu0 0
      %793 = vmatpush1.bf16.msra.mxu0 0
      %794 = vmatprep.subr.bf16.mxu0 0
      %795 = vmatpush1.bf16.msra.mxu0 0
      %796 = vmatprep.subr.bf16.mxu0 0
      %797 = vmatpush1.bf16.msra.mxu0 0
      %798 = vmatprep.subr.bf16.mxu0 0
      %799 = vmatpush1.bf16.msra.mxu0 0
      %800 = vmatprep.subr.bf16.mxu0 0
      %801 = vmatpush1.bf16.msra.mxu0 0
      %802 = vmatprep.mubr.bf16.mxu0 0
      %803 = vmatmul.mubr.bf16.gmra.mrb[0].mxu0 %v719
      %v804 = vpop.f32.mrb[0].mxu0
      %v805 = vadd.f32 0.0, %v804
      %v806 = vpop.f32.mrb[0].mxu0
      %v807 = vpop.f32.mrb[0].mxu0
      %v808 = vadd.f32 0.0, %v807
      %v809 = vpop.f32.mrb[0].mxu0
      %810 = vmatprep.mubr.bf16.mxu0 0
      %811 = vmatmul.mubr.bf16.gmra.mrb[0].mxu0 %v722
      %v812 = vpop.f32.mrb[0].mxu0
      %v813 = vadd.f32 0.0, %v812
      %v814 = vpop.f32.mrb[0].mxu0
      %v815 = vpop.f32.mrb[0].mxu0
      %v816 = vadd.f32 0.0, %v815
      %v817 = vpop.f32.mrb[0].mxu0
      %818 = vmatprep.mubr.bf16.mxu0 0
      %819 = vmatmul.mubr.bf16.gmra.mrb[0].mxu0 %v725
      %v820 = vpop.f32.mrb[0].mxu0
      %v821 = vadd.f32 0.0, %v820
      %v822 = vpop.f32.mrb[0].mxu0
      %v823 = vpop.f32.mrb[0].mxu0
      %v824 = vadd.f32 0.0, %v823
      %v825 = vpop.f32.mrb[0].mxu0
      %826 = vmatprep.mubr.bf16.mxu0 0
      %827 = vmatmul.mubr.bf16.gmra.mrb[0].mxu0 %v728
      %v828 = vpop.f32.mrb[0].mxu0
      %v829 = vadd.f32 0.0, %v828
      %v830 = vpop.f32.mrb[0].mxu0
      %v831 = vpop.f32.mrb[0].mxu0
      %v832 = vadd.f32 0.0, %v831
      %v833 = vpop.f32.mrb[0].mxu0
      %834 = vmatprep.mubr.bf16.mxu0 0
      %835 = vmatmul.mubr.bf16.gmra.mrb[0].mxu0 %v731
      %v836 = vpop.f32.mrb[0].mxu0
      %v837 = vadd.f32 0.0, %v836
      %v838 = vpop.f32.mrb[0].mxu0
      %v839 = vpop.f32.mrb[0].mxu0
      %v840 = vadd.f32 0.0, %v839
      %v841 = vpop.f32.mrb[0].mxu0
      %842 = vmatprep.mubr.bf16.mxu0 0
      %843 = vmatmul.mubr.bf16.gmra.mrb[0].mxu0 %v734
      %v844 = vpop.f32.mrb[0].mxu0
      %v845 = vadd.f32 0.0, %v844
      %v846 = vpop.f32.mrb[0].mxu0
      %v847 = vpop.f32.mrb[0].mxu0
      %v848 = vadd.f32 0.0, %v847
      %v849 = vpop.f32.mrb[0].mxu0
      %850 = vmatprep.mubr.bf16.mxu0 0
      %851 = vmatmul.mubr.bf16.gmra.mrb[0].mxu0 %v737
      %v852 = vpop.f32.mrb[0].mxu0
      %v853 = vadd.f32 0.0, %v852
      %v854 = vpop.f32.mrb[0].mxu0
      %v855 = vpop.f32.mrb[0].mxu0
      %v856 = vadd.f32 0.0, %v855
      %v857 = vpop.f32.mrb[0].mxu0
      %858 = vmatprep.mubr.bf16.mxu0 0
      %859 = vmatmul.mubr.bf16.gmra.mrb[0].mxu0 %v740
      %v860 = vpop.f32.mrb[0].mxu0
      %v861 = vadd.f32 0.0, %v860
      %v862 = vpop.f32.mrb[0].mxu0
      %v863 = vpop.f32.mrb[0].mxu0
      %v864 = vadd.f32 0.0, %v863
      %v865 = vpop.f32.mrb[0].mxu0
      %866 = vmatprep.mubr.bf16.mxu0 0
      %867 = vmatmul.mubr.bf16.gmra.mrb[0].mxu0 %v743
      %v868 = vpop.f32.mrb[0].mxu0
      %v869 = vadd.f32 0.0, %v868
      %v870 = vpop.f32.mrb[0].mxu0
      %v871 = vpop.f32.mrb[0].mxu0
      %v872 = vadd.f32 0.0, %v871
      %v873 = vpop.f32.mrb[0].mxu0
      %874 = vmatprep.mubr.bf16.mxu0 0
      %875 = vmatmul.mubr.bf16.gmra.mrb[0].mxu0 %v746
      %v876 = vpop.f32.mrb[0].mxu0
      %v877 = vadd.f32 0.0, %v876
      %v878 = vpop.f32.mrb[0].mxu0
      %v879 = vpop.f32.mrb[0].mxu0
      %v880 = vadd.f32 0.0, %v879
      %v881 = vpop.f32.mrb[0].mxu0
      %882 = vmatprep.mubr.bf16.mxu0 0
      %883 = vmatmul.mubr.bf16.gmra.mrb[0].mxu0 %v749
      %v884 = vpop.f32.mrb[0].mxu0
      %v885 = vadd.f32 0.0, %v884
      %v886 = vpop.f32.mrb[0].mxu0
      %v887 = vpop.f32.mrb[0].mxu0
      %v888 = vadd.f32 0.0, %v887
      %v889 = vpop.f32.mrb[0].mxu0
      %890 = vmatprep.mubr.bf16.mxu0 0
      %891 = vmatmul.mubr.bf16.gmra.mrb[0].mxu0 %v752
      %v892 = vpop.f32.mrb[0].mxu0
      %v893 = vadd.f32 0.0, %v892
      %v894 = vpop.f32.mrb[0].mxu0
      %v895 = vpop.f32.mrb[0].mxu0
      %v896 = vadd.f32 0.0, %v895
      %v897 = vpop.f32.mrb[0].mxu0
      %898 = vmatprep.mubr.bf16.mxu0 0
      %899 = vmatmul.mubr.bf16.gmra.mrb[0].mxu0 %v755
      %v900 = vpop.f32.mrb[0].mxu0
      %v901 = vadd.f32 0.0, %v900
      %v902 = vpop.f32.mrb[0].mxu0
      %v903 = vpop.f32.mrb[0].mxu0
      %v904 = vadd.f32 0.0, %v903
      %v905 = vpop.f32.mrb[0].mxu0
      %906 = vmatprep.mubr.bf16.mxu0 0
      %907 = vmatmul.mubr.bf16.gmra.mrb[0].mxu0 %v758
      %v908 = vpop.f32.mrb[0].mxu0
      %v909 = vadd.f32 0.0, %v908
      %v910 = vpop.f32.mrb[0].mxu0
      %v911 = vpop.f32.mrb[0].mxu0
      %v912 = vadd.f32 0.0, %v911
      %v913 = vpop.f32.mrb[0].mxu0
      %914 = vmatprep.mubr.bf16.mxu0 0
      %915 = vmatmul.mubr.bf16.gmra.mrb[0].mxu0 %v761
      %v916 = vpop.f32.mrb[0].mxu0
      %v917 = vadd.f32 0.0, %v916
      %v918 = vpop.f32.mrb[0].mxu0
      %v919 = vpop.f32.mrb[0].mxu0
      %v920 = vadd.f32 0.0, %v919
      %v921 = vpop.f32.mrb[0].mxu0
      %922 = vmatprep.mubr.bf16.mxu0 0
      %923 = vmatmul.mubr.bf16.gmra.mrb[0].mxu0 %v764
      %v924 = vpop.f32.mrb[0].mxu0
      %v925 = vadd.f32 0.0, %v924
      %v926 = vpop.f32.mrb[0].mxu0
      %v927 = vpop.f32.mrb[0].mxu0
      %v928 = vadd.f32 0.0, %v927
      %v929 = vpop.f32.mrb[0].mxu0
      %930 = vdwg.mxu0
      %v963 = vunpack.c.l.b16 %v225
      %v964 = vunpack.c.l.b16 %v226
      %v965 = vunpack.c.l.b16 %v228
      %v966 = vunpack.c.l.b16 %v229
      %v967 = vunpack.c.l.b16 %v231
      %v968 = vunpack.c.l.b16 %v232
      %v969 = vunpack.c.l.b16 %v234
      %v970 = vunpack.c.l.b16 %v235
      %v971 = vunpack.c.l.b16 %v237
      %v972 = vunpack.c.l.b16 %v238
      %v973 = vunpack.c.l.b16 %v240
      %v974 = vunpack.c.l.b16 %v241
      %v975 = vunpack.c.l.b16 %v243
      %v976 = vunpack.c.l.b16 %v244
      %v977 = vunpack.c.l.b16 %v246
      %v978 = vunpack.c.l.b16 %v247
      %v979 = vunpack.c.l.b16 %v249
      %v980 = vunpack.c.l.b16 %v250
      %v981 = vunpack.c.l.b16 %v252
      %v982 = vunpack.c.l.b16 %v253
      %v983 = vunpack.c.l.b16 %v255
      %v984 = vunpack.c.l.b16 %v256
      %v985 = vunpack.c.l.b16 %v258
      %v986 = vunpack.c.l.b16 %v259
      %v987 = vunpack.c.l.b16 %v261
      %v988 = vunpack.c.l.b16 %v262
      %v989 = vunpack.c.l.b16 %v264
      %v990 = vunpack.c.l.b16 %v265
      %v991 = vunpack.c.l.b16 %v267
      %v992 = vunpack.c.l.b16 %v268
      %v993 = vunpack.c.l.b16 %v270
      %v994 = vunpack.c.l.b16 %v271
      %v995 = vpack.c.b16 %v964, %v963
      %v996 = vpack.c.b16 %v966, %v965
      %v997 = vpack.c.b16 %v968, %v967
      %v998 = vpack.c.b16 %v970, %v969
      %v999 = vpack.c.b16 %v972, %v971
      %v1000 = vpack.c.b16 %v974, %v973
      %v1001 = vpack.c.b16 %v976, %v975
      %v1002 = vpack.c.b16 %v978, %v977
      %v1003 = vpack.c.b16 %v980, %v979
      %v1004 = vpack.c.b16 %v982, %v981
      %v1005 = vpack.c.b16 %v984, %v983
      %v1006 = vpack.c.b16 %v986, %v985
      %v1007 = vpack.c.b16 %v988, %v987
      %v1008 = vpack.c.b16 %v990, %v989
      %v1009 = vpack.c.b16 %v992, %v991
      %v1010 = vpack.c.b16 %v994, %v993
      %v1012 = vsel %vm717, %v995, 0
      %v1015 = vsel %vm717, %v996, 0
      %v1018 = vsel %vm717, %v997, 0
      %v1021 = vsel %vm717, %v998, 0
      %v1024 = vsel %vm717, %v999, 0
      %v1027 = vsel %vm717, %v1000, 0
      %v1030 = vsel %vm717, %v1001, 0
      %v1033 = vsel %vm717, %v1002, 0
      %v1036 = vsel %vm717, %v1003, 0
      %v1039 = vsel %vm717, %v1004, 0
      %v1042 = vsel %vm717, %v1005, 0
      %v1045 = vsel %vm717, %v1006, 0
      %v1048 = vsel %vm717, %v1007, 0
      %v1051 = vsel %vm717, %v1008, 0
      %v1054 = vsel %vm717, %v1009, 0
      %v1057 = vsel %vm717, %v1010, 0
      %v1060 = vsel %vm766, %v279, 0
      %1062 = vmatprep.subr.bf16.mxu0 0
      %1063 = vmatpush1.bf16.msra.mxu0 %v1060
      %1064 = vmatprep.subr.bf16.mxu0 0
      %1065 = vmatpush1.bf16.msra.mxu0 0
      %1066 = vmatprep.subr.bf16.mxu0 0
      %1067 = vmatpush1.bf16.msra.mxu0 0
      %1068 = vmatprep.subr.bf16.mxu0 0
      %1069 = vmatpush1.bf16.msra.mxu0 0
      %1070 = vmatprep.subr.bf16.mxu0 0
      %1071 = vmatpush1.bf16.msra.mxu0 0
      %1072 = vmatprep.subr.bf16.mxu0 0
      %1073 = vmatpush1.bf16.msra.mxu0 0
      %1074 = vmatprep.subr.bf16.mxu0 0
      %1075 = vmatpush1.bf16.msra.mxu0 0
      %1076 = vmatprep.subr.bf16.mxu0 0
      %1077 = vmatpush1.bf16.msra.mxu0 0
      %1078 = vmatprep.subr.bf16.mxu0 0
      %1079 = vmatpush1.bf16.msra.mxu0 0
      %1080 = vmatprep.subr.bf16.mxu0 0
      %1081 = vmatpush1.bf16.msra.mxu0 0
      %1082 = vmatprep.subr.bf16.mxu0 0
      %1083 = vmatpush1.bf16.msra.mxu0 0
      %1084 = vmatprep.subr.bf16.mxu0 0
      %1085 = vmatpush1.bf16.msra.mxu0 0
      %1086 = vmatprep.subr.bf16.mxu0 0
      %1087 = vmatpush1.bf16.msra.mxu0 0
      %1088 = vmatprep.subr.bf16.mxu0 0
      %1089 = vmatpush1.bf16.msra.mxu0 0
      %1090 = vmatprep.subr.bf16.mxu0 0
      %1091 = vmatpush1.bf16.msra.mxu0 0
      %1092 = vmatprep.subr.bf16.mxu0 0
      %1093 = vmatpush1.bf16.msra.mxu0 0
      %1094 = vmatprep.mubr.bf16.mxu0 0
      %1095 = vmatmul.mubr.bf16.gmra.mrb[0].mxu0 %v1012
      %v1096 = vpop.f32.mrb[0].mxu0
      %v1097 = vadd.f32 %v805, %v1096
      %v1098 = vpop.f32.mrb[0].mxu0
      %v1099 = vpop.f32.mrb[0].mxu0
      %v1100 = vadd.f32 %v808, %v1099
      %v1101 = vpop.f32.mrb[0].mxu0
      %1102 = vmatprep.mubr.bf16.mxu0 0
      %1103 = vmatmul.mubr.bf16.gmra.mrb[0].mxu0 %v1015
      %v1104 = vpop.f32.mrb[0].mxu0
      %v1105 = vadd.f32 %v813, %v1104
      %v1106 = vpop.f32.mrb[0].mxu0
      %v1107 = vpop.f32.mrb[0].mxu0
      %v1108 = vadd.f32 %v816, %v1107
      %v1109 = vpop.f32.mrb[0].mxu0
      %1110 = vmatprep.mubr.bf16.mxu0 0
      %1111 = vmatmul.mubr.bf16.gmra.mrb[0].mxu0 %v1018
      %v1112 = vpop.f32.mrb[0].mxu0
      %v1113 = vadd.f32 %v821, %v1112
      %v1114 = vpop.f32.mrb[0].mxu0
      %v1115 = vpop.f32.mrb[0].mxu0
      %v1116 = vadd.f32 %v824, %v1115
      %v1117 = vpop.f32.mrb[0].mxu0
      %1118 = vmatprep.mubr.bf16.mxu0 0
      %1119 = vmatmul.mubr.bf16.gmra.mrb[0].mxu0 %v1021
      %v1120 = vpop.f32.mrb[0].mxu0
      %v1121 = vadd.f32 %v829, %v1120
      %v1122 = vpop.f32.mrb[0].mxu0
      %v1123 = vpop.f32.mrb[0].mxu0
      %v1124 = vadd.f32 %v832, %v1123
      %v1125 = vpop.f32.mrb[0].mxu0
      %1126 = vmatprep.mubr.bf16.mxu0 0
      %1127 = vmatmul.mubr.bf16.gmra.mrb[0].mxu0 %v1024
      %v1128 = vpop.f32.mrb[0].mxu0
      %v1129 = vadd.f32 %v837, %v1128
      %v1130 = vpop.f32.mrb[0].mxu0
      %v1131 = vpop.f32.mrb[0].mxu0
      %v1132 = vadd.f32 %v840, %v1131
      %v1133 = vpop.f32.mrb[0].mxu0
      %1134 = vmatprep.mubr.bf16.mxu0 0
      %1135 = vmatmul.mubr.bf16.gmra.mrb[0].mxu0 %v1027
      %v1136 = vpop.f32.mrb[0].mxu0
      %v1137 = vadd.f32 %v845, %v1136
      %v1138 = vpop.f32.mrb[0].mxu0
      %v1139 = vpop.f32.mrb[0].mxu0
      %v1140 = vadd.f32 %v848, %v1139
      %v1141 = vpop.f32.mrb[0].mxu0
      %1142 = vmatprep.mubr.bf16.mxu0 0
      %1143 = vmatmul.mubr.bf16.gmra.mrb[0].mxu0 %v1030
      %v1144 = vpop.f32.mrb[0].mxu0
      %v1145 = vadd.f32 %v853, %v1144
      %v1146 = vpop.f32.mrb[0].mxu0
      %v1147 = vpop.f32.mrb[0].mxu0
      %v1148 = vadd.f32 %v856, %v1147
      %v1149 = vpop.f32.mrb[0].mxu0
      %1150 = vmatprep.mubr.bf16.mxu0 0
      %1151 = vmatmul.mubr.bf16.gmra.mrb[0].mxu0 %v1033
      %v1152 = vpop.f32.mrb[0].mxu0
      %v1153 = vadd.f32 %v861, %v1152
      %v1154 = vpop.f32.mrb[0].mxu0
      %v1155 = vpop.f32.mrb[0].mxu0
      %v1156 = vadd.f32 %v864, %v1155
      %v1157 = vpop.f32.mrb[0].mxu0
      %1158 = vmatprep.mubr.bf16.mxu0 0
      %1159 = vmatmul.mubr.bf16.gmra.mrb[0].mxu0 %v1036
      %v1160 = vpop.f32.mrb[0].mxu0
      %v1161 = vadd.f32 %v869, %v1160
      %v1162 = vpop.f32.mrb[0].mxu0
      %v1163 = vpop.f32.mrb[0].mxu0
      %v1164 = vadd.f32 %v872, %v1163
      %v1165 = vpop.f32.mrb[0].mxu0
      %1166 = vmatprep.mubr.bf16.mxu0 0
      %1167 = vmatmul.mubr.bf16.gmra.mrb[0].mxu0 %v1039
      %v1168 = vpop.f32.mrb[0].mxu0
      %v1169 = vadd.f32 %v877, %v1168
      %v1170 = vpop.f32.mrb[0].mxu0
      %v1171 = vpop.f32.mrb[0].mxu0
      %v1172 = vadd.f32 %v880, %v1171
      %v1173 = vpop.f32.mrb[0].mxu0
      %1174 = vmatprep.mubr.bf16.mxu0 0
      %1175 = vmatmul.mubr.bf16.gmra.mrb[0].mxu0 %v1042
      %v1176 = vpop.f32.mrb[0].mxu0
      %v1177 = vadd.f32 %v885, %v1176
      %v1178 = vpop.f32.mrb[0].mxu0
      %v1179 = vpop.f32.mrb[0].mxu0
      %v1180 = vadd.f32 %v888, %v1179
      %v1181 = vpop.f32.mrb[0].mxu0
      %1182 = vmatprep.mubr.bf16.mxu0 0
      %1183 = vmatmul.mubr.bf16.gmra.mrb[0].mxu0 %v1045
      %v1184 = vpop.f32.mrb[0].mxu0
      %v1185 = vadd.f32 %v893, %v1184
      %v1186 = vpop.f32.mrb[0].mxu0
      %v1187 = vpop.f32.mrb[0].mxu0
      %v1188 = vadd.f32 %v896, %v1187
      %v1189 = vpop.f32.mrb[0].mxu0
      %1190 = vmatprep.mubr.bf16.mxu0 0
      %1191 = vmatmul.mubr.bf16.gmra.mrb[0].mxu0 %v1048
      %v1192 = vpop.f32.mrb[0].mxu0
      %v1193 = vadd.f32 %v901, %v1192
      %v1194 = vpop.f32.mrb[0].mxu0
      %v1195 = vpop.f32.mrb[0].mxu0
      %v1196 = vadd.f32 %v904, %v1195
      %v1197 = vpop.f32.mrb[0].mxu0
      %1198 = vmatprep.mubr.bf16.mxu0 0
      %1199 = vmatmul.mubr.bf16.gmra.mrb[0].mxu0 %v1051
      %v1200 = vpop.f32.mrb[0].mxu0
      %v1201 = vadd.f32 %v909, %v1200
      %v1202 = vpop.f32.mrb[0].mxu0
      %v1203 = vpop.f32.mrb[0].mxu0
      %v1204 = vadd.f32 %v912, %v1203
      %v1205 = vpop.f32.mrb[0].mxu0
      %1206 = vmatprep.mubr.bf16.mxu0 0
      %1207 = vmatmul.mubr.bf16.gmra.mrb[0].mxu0 %v1054
      %v1208 = vpop.f32.mrb[0].mxu0
      %v1209 = vadd.f32 %v917, %v1208
      %v1210 = vpop.f32.mrb[0].mxu0
      %v1211 = vpop.f32.mrb[0].mxu0
      %v1212 = vadd.f32 %v920, %v1211
      %v1213 = vpop.f32.mrb[0].mxu0
      %1214 = vmatprep.mubr.bf16.mxu0 0
      %1215 = vmatmul.mubr.bf16.gmra.mrb[0].mxu0 %v1057
      %v1216 = vpop.f32.mrb[0].mxu0
      %v1217 = vadd.f32 %v925, %v1216
      %v1218 = vpop.f32.mrb[0].mxu0
      %v1219 = vpop.f32.mrb[0].mxu0
      %v1220 = vadd.f32 %v928, %v1219
      %v1221 = vpop.f32.mrb[0].mxu0
      %1222 = vdwg.mxu0
      %vm1239 = vcmask 1042432
      %vm1240 = vcmask 1046532
      %vm1241 = vmor %vm1239, %vm1240
      %v1242 = vrot.slane %v225, 5
      %v1243 = vrot.slane %v1242, 4
      %v1244 = vrot.slane %v226, 5
      %v1245 = vsel %vm1241, %v1243, %v1244
      %v1246 = vrot.slane %v1244, 4
      %v1247 = vrot.slane %v227, 5
      %v1248 = vsel %vm1241, %v1246, %v1247
      %v1249 = vrot.slane %v228, 5
      %v1250 = vrot.slane %v1249, 4
      %v1251 = vrot.slane %v229, 5
      %v1252 = vsel %vm1241, %v1250, %v1251
      %v1253 = vrot.slane %v1251, 4
      %v1254 = vrot.slane %v230, 5
      %v1255 = vsel %vm1241, %v1253, %v1254
      %v1256 = vrot.slane %v231, 5
      %v1257 = vrot.slane %v1256, 4
      %v1258 = vrot.slane %v232, 5
      %v1259 = vsel %vm1241, %v1257, %v1258
      %v1260 = vrot.slane %v1258, 4
      %v1261 = vrot.slane %v233, 5
      %v1262 = vsel %vm1241, %v1260, %v1261
      %v1263 = vrot.slane %v234, 5
      %v1264 = vrot.slane %v1263, 4
      %v1265 = vrot.slane %v235, 5
      %v1266 = vsel %vm1241, %v1264, %v1265
      %v1267 = vrot.slane %v1265, 4
      %v1268 = vrot.slane %v236, 5
      %v1269 = vsel %vm1241, %v1267, %v1268
      %v1270 = vrot.slane %v237, 5
      %v1271 = vrot.slane %v1270, 4
      %v1272 = vrot.slane %v238, 5
      %v1273 = vsel %vm1241, %v1271, %v1272
      %v1274 = vrot.slane %v1272, 4
      %v1275 = vrot.slane %v239, 5
      %v1276 = vsel %vm1241, %v1274, %v1275
      %v1277 = vrot.slane %v240, 5
      %v1278 = vrot.slane %v1277, 4
      %v1279 = vrot.slane %v241, 5
      %v1280 = vsel %vm1241, %v1278, %v1279
      %v1281 = vrot.slane %v1279, 4
      %v1282 = vrot.slane %v242, 5
      %v1283 = vsel %vm1241, %v1281, %v1282
      %v1284 = vrot.slane %v243, 5
      %v1285 = vrot.slane %v1284, 4
      %v1286 = vrot.slane %v244, 5
      %v1287 = vsel %vm1241, %v1285, %v1286
      %v1288 = vrot.slane %v1286, 4
      %v1289 = vrot.slane %v245, 5
      %v1290 = vsel %vm1241, %v1288, %v1289
      %v1291 = vrot.slane %v246, 5
      %v1292 = vrot.slane %v1291, 4
      %v1293 = vrot.slane %v247, 5
      %v1294 = vsel %vm1241, %v1292, %v1293
      %v1295 = vrot.slane %v1293, 4
      %v1296 = vrot.slane %v248, 5
      %v1297 = vsel %vm1241, %v1295, %v1296
      %v1298 = vrot.slane %v249, 5
      %v1299 = vrot.slane %v1298, 4
      %v1300 = vrot.slane %v250, 5
      %v1301 = vsel %vm1241, %v1299, %v1300
      %v1302 = vrot.slane %v1300, 4
      %v1303 = vrot.slane %v251, 5
      %v1304 = vsel %vm1241, %v1302, %v1303
      %v1305 = vrot.slane %v252, 5
      %v1306 = vrot.slane %v1305, 4
      %v1307 = vrot.slane %v253, 5
      %v1308 = vsel %vm1241, %v1306, %v1307
      %v1309 = vrot.slane %v1307, 4
      %v1310 = vrot.slane %v254, 5
      %v1311 = vsel %vm1241, %v1309, %v1310
      %v1312 = vrot.slane %v255, 5
      %v1313 = vrot.slane %v1312, 4
      %v1314 = vrot.slane %v256, 5
      %v1315 = vsel %vm1241, %v1313, %v1314
      %v1316 = vrot.slane %v1314, 4
      %v1317 = vrot.slane %v257, 5
      %v1318 = vsel %vm1241, %v1316, %v1317
      %v1319 = vrot.slane %v258, 5
      %v1320 = vrot.slane %v1319, 4
      %v1321 = vrot.slane %v259, 5
      %v1322 = vsel %vm1241, %v1320, %v1321
      %v1323 = vrot.slane %v1321, 4
      %v1324 = vrot.slane %v260, 5
      %v1325 = vsel %vm1241, %v1323, %v1324
      %v1326 = vrot.slane %v261, 5
      %v1327 = vrot.slane %v1326, 4
      %v1328 = vrot.slane %v262, 5
      %v1329 = vsel %vm1241, %v1327, %v1328
      %v1330 = vrot.slane %v1328, 4
      %v1331 = vrot.slane %v263, 5
      %v1332 = vsel %vm1241, %v1330, %v1331
      %v1333 = vrot.slane %v264, 5
      %v1334 = vrot.slane %v1333, 4
      %v1335 = vrot.slane %v265, 5
      %v1336 = vsel %vm1241, %v1334, %v1335
      %v1337 = vrot.slane %v1335, 4
      %v1338 = vrot.slane %v266, 5
      %v1339 = vsel %vm1241, %v1337, %v1338
      %v1340 = vrot.slane %v267, 5
      %v1341 = vrot.slane %v1340, 4
      %v1342 = vrot.slane %v268, 5
      %v1343 = vsel %vm1241, %v1341, %v1342
      %v1344 = vrot.slane %v1342, 4
      %v1345 = vrot.slane %v269, 5
      %v1346 = vsel %vm1241, %v1344, %v1345
      %v1347 = vrot.slane %v270, 5
      %v1348 = vrot.slane %v1347, 4
      %v1349 = vrot.slane %v271, 5
      %v1350 = vsel %vm1241, %v1348, %v1349
      %v1351 = vrot.slane %v1349, 4
      %v1352 = vrot.slane %v272, 5
      %v1353 = vsel %vm1241, %v1351, %v1352
      %s1354 = scalar_lea.vmem %s211, 4
      %v1355 = vld [vmem:[%s1354] sm:$0x3]
      %v1356 = vunpack.c.l.b16 %v1245
      %v1357 = vunpack.c.l.b16 %v1248
      %v1358 = vunpack.c.l.b16 %v1252
      %v1359 = vunpack.c.l.b16 %v1255
      %v1360 = vunpack.c.l.b16 %v1259
      %v1361 = vunpack.c.l.b16 %v1262
      %v1362 = vunpack.c.l.b16 %v1266
      %v1363 = vunpack.c.l.b16 %v1269
      %v1364 = vunpack.c.l.b16 %v1273
      %v1365 = vunpack.c.l.b16 %v1276
      %v1366 = vunpack.c.l.b16 %v1280
      %v1367 = vunpack.c.l.b16 %v1283
      %v1368 = vunpack.c.l.b16 %v1287
      %v1369 = vunpack.c.l.b16 %v1290
      %v1370 = vunpack.c.l.b16 %v1294
      %v1371 = vunpack.c.l.b16 %v1297
      %v1372 = vunpack.c.l.b16 %v1301
      %v1373 = vunpack.c.l.b16 %v1304
      %v1374 = vunpack.c.l.b16 %v1308
      %v1375 = vunpack.c.l.b16 %v1311
      %v1376 = vunpack.c.l.b16 %v1315
      %v1377 = vunpack.c.l.b16 %v1318
      %v1378 = vunpack.c.l.b16 %v1322
      %v1379 = vunpack.c.l.b16 %v1325
      %v1380 = vunpack.c.l.b16 %v1329
      %v1381 = vunpack.c.l.b16 %v1332
      %v1382 = vunpack.c.l.b16 %v1336
      %v1383 = vunpack.c.l.b16 %v1339
      %v1384 = vunpack.c.l.b16 %v1343
      %v1385 = vunpack.c.l.b16 %v1346
      %v1386 = vunpack.c.l.b16 %v1350
      %v1387 = vunpack.c.l.b16 %v1353
      %v1388 = vpack.c.b16 %v1357, %v1356
      %v1389 = vpack.c.b16 %v1359, %v1358
      %v1390 = vpack.c.b16 %v1361, %v1360
      %v1391 = vpack.c.b16 %v1363, %v1362
      %v1392 = vpack.c.b16 %v1365, %v1364
      %v1393 = vpack.c.b16 %v1367, %v1366
      %v1394 = vpack.c.b16 %v1369, %v1368
      %v1395 = vpack.c.b16 %v1371, %v1370
      %v1396 = vpack.c.b16 %v1373, %v1372
      %v1397 = vpack.c.b16 %v1375, %v1374
      %v1398 = vpack.c.b16 %v1377, %v1376
      %v1399 = vpack.c.b16 %v1379, %v1378
      %v1400 = vpack.c.b16 %v1381, %v1380
      %v1401 = vpack.c.b16 %v1383, %v1382
      %v1402 = vpack.c.b16 %v1385, %v1384
      %v1403 = vpack.c.b16 %v1387, %v1386
      %v1405 = vsel %vm717, %v1388, 0
      %v1408 = vsel %vm717, %v1389, 0
      %v1411 = vsel %vm717, %v1390, 0
      %v1414 = vsel %vm717, %v1391, 0
      %v1417 = vsel %vm717, %v1392, 0
      %v1420 = vsel %vm717, %v1393, 0
      %v1423 = vsel %vm717, %v1394, 0
      %v1426 = vsel %vm717, %v1395, 0
      %v1429 = vsel %vm717, %v1396, 0
      %v1432 = vsel %vm717, %v1397, 0
      %v1435 = vsel %vm717, %v1398, 0
      %v1438 = vsel %vm717, %v1399, 0
      %v1441 = vsel %vm717, %v1400, 0
      %v1444 = vsel %vm717, %v1401, 0
      %v1447 = vsel %vm717, %v1402, 0
      %v1450 = vsel %vm717, %v1403, 0
      %v1453 = vsel %vm766, %v1355, 0
      %1455 = vmatprep.subr.bf16.mxu0 0
      %1456 = vmatpush1.bf16.msra.mxu0 %v1453
      %1457 = vmatprep.subr.bf16.mxu0 0
      %1458 = vmatpush1.bf16.msra.mxu0 0
      %1459 = vmatprep.subr.bf16.mxu0 0
      %1460 = vmatpush1.bf16.msra.mxu0 0
      %1461 = vmatprep.subr.bf16.mxu0 0
      %1462 = vmatpush1.bf16.msra.mxu0 0
      %1463 = vmatprep.subr.bf16.mxu0 0
      %1464 = vmatpush1.bf16.msra.mxu0 0
      %1465 = vmatprep.subr.bf16.mxu0 0
      %1466 = vmatpush1.bf16.msra.mxu0 0
      %1467 = vmatprep.subr.bf16.mxu0 0
      %1468 = vmatpush1.bf16.msra.mxu0 0
      %1469 = vmatprep.subr.bf16.mxu0 0
      %1470 = vmatpush1.bf16.msra.mxu0 0
      %1471 = vmatprep.subr.bf16.mxu0 0
      %1472 = vmatpush1.bf16.msra.mxu0 0
      %1473 = vmatprep.subr.bf16.mxu0 0
      %1474 = vmatpush1.bf16.msra.mxu0 0
      %1475 = vmatprep.subr.bf16.mxu0 0
      %1476 = vmatpush1.bf16.msra.mxu0 0
      %1477 = vmatprep.subr.bf16.mxu0 0
      %1478 = vmatpush1.bf16.msra.mxu0 0
      %1479 = vmatprep.subr.bf16.mxu0 0
      %1480 = vmatpush1.bf16.msra.mxu0 0
      %1481 = vmatprep.subr.bf16.mxu0 0
      %1482 = vmatpush1.bf16.msra.mxu0 0
      %1483 = vmatprep.subr.bf16.mxu0 0
      %1484 = vmatpush1.bf16.msra.mxu0 0
      %1485 = vmatprep.subr.bf16.mxu0 0
      %1486 = vmatpush1.bf16.msra.mxu0 0
      %1487 = vmatprep.mubr.bf16.mxu0 0
      %1488 = vmatmul.mubr.bf16.gmra.mrb[0].mxu0 %v1405
      %v1489 = vpop.f32.mrb[0].mxu0
      %v1490 = vadd.f32 0.0, %v1489
      %v1491 = vpop.f32.mrb[0].mxu0
      %v1492 = vpop.f32.mrb[0].mxu0
      %v1493 = vadd.f32 0.0, %v1492
      %v1494 = vpop.f32.mrb[0].mxu0
      %1495 = vmatprep.mubr.bf16.mxu0 0
      %1496 = vmatmul.mubr.bf16.gmra.mrb[0].mxu0 %v1408
      %v1497 = vpop.f32.mrb[0].mxu0
      %v1498 = vadd.f32 0.0, %v1497
      %v1499 = vpop.f32.mrb[0].mxu0
      %v1500 = vpop.f32.mrb[0].mxu0
      %v1501 = vadd.f32 0.0, %v1500
      %v1502 = vpop.f32.mrb[0].mxu0
      %1503 = vmatprep.mubr.bf16.mxu0 0
      %1504 = vmatmul.mubr.bf16.gmra.mrb[0].mxu0 %v1411
      %v1505 = vpop.f32.mrb[0].mxu0
      %v1506 = vadd.f32 0.0, %v1505
      %v1507 = vpop.f32.mrb[0].mxu0
      %v1508 = vpop.f32.mrb[0].mxu0
      %v1509 = vadd.f32 0.0, %v1508
      %v1510 = vpop.f32.mrb[0].mxu0
      %1511 = vmatprep.mubr.bf16.mxu0 0
      %1512 = vmatmul.mubr.bf16.gmra.mrb[0].mxu0 %v1414
      %v1513 = vpop.f32.mrb[0].mxu0
      %v1514 = vadd.f32 0.0, %v1513
      %v1515 = vpop.f32.mrb[0].mxu0
      %v1516 = vpop.f32.mrb[0].mxu0
      %v1517 = vadd.f32 0.0, %v1516
      %v1518 = vpop.f32.mrb[0].mxu0
      %1519 = vmatprep.mubr.bf16.mxu0 0
      %1520 = vmatmul.mubr.bf16.gmra.mrb[0].mxu0 %v1417
      %v1521 = vpop.f32.mrb[0].mxu0
      %v1522 = vadd.f32 0.0, %v1521
      %v1523 = vpop.f32.mrb[0].mxu0
      %v1524 = vpop.f32.mrb[0].mxu0
      %v1525 = vadd.f32 0.0, %v1524
      %v1526 = vpop.f32.mrb[0].mxu0
      %1527 = vmatprep.mubr.bf16.mxu0 0
      %1528 = vmatmul.mubr.bf16.gmra.mrb[0].mxu0 %v1420
      %v1529 = vpop.f32.mrb[0].mxu0
      %v1530 = vadd.f32 0.0, %v1529
      %v1531 = vpop.f32.mrb[0].mxu0
      %v1532 = vpop.f32.mrb[0].mxu0
      %v1533 = vadd.f32 0.0, %v1532
      %v1534 = vpop.f32.mrb[0].mxu0
      %1535 = vmatprep.mubr.bf16.mxu0 0
      %1536 = vmatmul.mubr.bf16.gmra.mrb[0].mxu0 %v1423
      %v1537 = vpop.f32.mrb[0].mxu0
      %v1538 = vadd.f32 0.0, %v1537
      %v1539 = vpop.f32.mrb[0].mxu0
      %v1540 = vpop.f32.mrb[0].mxu0
      %v1541 = vadd.f32 0.0, %v1540
      %v1542 = vpop.f32.mrb[0].mxu0
      %1543 = vmatprep.mubr.bf16.mxu0 0
      %1544 = vmatmul.mubr.bf16.gmra.mrb[0].mxu0 %v1426
      %v1545 = vpop.f32.mrb[0].mxu0
      %v1546 = vadd.f32 0.0, %v1545
      %v1547 = vpop.f32.mrb[0].mxu0
      %v1548 = vpop.f32.mrb[0].mxu0
      %v1549 = vadd.f32 0.0, %v1548
      %v1550 = vpop.f32.mrb[0].mxu0
      %1551 = vmatprep.mubr.bf16.mxu0 0
      %1552 = vmatmul.mubr.bf16.gmra.mrb[0].mxu0 %v1429
      %v1553 = vpop.f32.mrb[0].mxu0
      %v1554 = vadd.f32 0.0, %v1553
      %v1555 = vpop.f32.mrb[0].mxu0
      %v1556 = vpop.f32.mrb[0].mxu0
      %v1557 = vadd.f32 0.0, %v1556
      %v1558 = vpop.f32.mrb[0].mxu0
      %1559 = vmatprep.mubr.bf16.mxu0 0
      %1560 = vmatmul.mubr.bf16.gmra.mrb[0].mxu0 %v1432
      %v1561 = vpop.f32.mrb[0].mxu0
      %v1562 = vadd.f32 0.0, %v1561
      %v1563 = vpop.f32.mrb[0].mxu0
      %v1564 = vpop.f32.mrb[0].mxu0
      %v1565 = vadd.f32 0.0, %v1564
      %v1566 = vpop.f32.mrb[0].mxu0
      %1567 = vmatprep.mubr.bf16.mxu0 0
      %1568 = vmatmul.mubr.bf16.gmra.mrb[0].mxu0 %v1435
      %v1569 = vpop.f32.mrb[0].mxu0
      %v1570 = vadd.f32 0.0, %v1569
      %v1571 = vpop.f32.mrb[0].mxu0
      %v1572 = vpop.f32.mrb[0].mxu0
      %v1573 = vadd.f32 0.0, %v1572
      %v1574 = vpop.f32.mrb[0].mxu0
      %1575 = vmatprep.mubr.bf16.mxu0 0
      %1576 = vmatmul.mubr.bf16.gmra.mrb[0].mxu0 %v1438
      %v1577 = vpop.f32.mrb[0].mxu0
      %v1578 = vadd.f32 0.0, %v1577
      %v1579 = vpop.f32.mrb[0].mxu0
      %v1580 = vpop.f32.mrb[0].mxu0
      %v1581 = vadd.f32 0.0, %v1580
      %v1582 = vpop.f32.mrb[0].mxu0
      %1583 = vmatprep.mubr.bf16.mxu0 0
      %1584 = vmatmul.mubr.bf16.gmra.mrb[0].mxu0 %v1441
      %v1585 = vpop.f32.mrb[0].mxu0
      %v1586 = vadd.f32 0.0, %v1585
      %v1587 = vpop.f32.mrb[0].mxu0
      %v1588 = vpop.f32.mrb[0].mxu0
      %v1589 = vadd.f32 0.0, %v1588
      %v1590 = vpop.f32.mrb[0].mxu0
      %1591 = vmatprep.mubr.bf16.mxu0 0
      %1592 = vmatmul.mubr.bf16.gmra.mrb[0].mxu0 %v1444
      %v1593 = vpop.f32.mrb[0].mxu0
      %v1594 = vadd.f32 0.0, %v1593
      %v1595 = vpop.f32.mrb[0].mxu0
      %v1596 = vpop.f32.mrb[0].mxu0
      %v1597 = vadd.f32 0.0, %v1596
      %v1598 = vpop.f32.mrb[0].mxu0
      %1599 = vmatprep.mubr.bf16.mxu0 0
      %1600 = vmatmul.mubr.bf16.gmra.mrb[0].mxu0 %v1447
      %v1601 = vpop.f32.mrb[0].mxu0
      %v1602 = vadd.f32 0.0, %v1601
      %v1603 = vpop.f32.mrb[0].mxu0
      %v1604 = vpop.f32.mrb[0].mxu0
      %v1605 = vadd.f32 0.0, %v1604
      %v1606 = vpop.f32.mrb[0].mxu0
      %1607 = vmatprep.mubr.bf16.mxu0 0
      %1608 = vmatmul.mubr.bf16.gmra.mrb[0].mxu0 %v1450
      %v1609 = vpop.f32.mrb[0].mxu0
      %v1610 = vadd.f32 0.0, %v1609
      %v1611 = vpop.f32.mrb[0].mxu0
      %v1612 = vpop.f32.mrb[0].mxu0
      %v1613 = vadd.f32 0.0, %v1612
      %v1614 = vpop.f32.mrb[0].mxu0
      %1615 = vdwg.mxu0
      %v1616 = vadd.f32 %v1097, %v1490
      %v1617 = vadd.f32 %v1100, %v1493
      %v1618 = vadd.f32 %v1105, %v1498
      %v1619 = vadd.f32 %v1108, %v1501
      %v1620 = vadd.f32 %v1113, %v1506
      %v1621 = vadd.f32 %v1116, %v1509
      %v1622 = vadd.f32 %v1121, %v1514
      %v1623 = vadd.f32 %v1124, %v1517
      %v1624 = vadd.f32 %v1129, %v1522
      %v1625 = vadd.f32 %v1132, %v1525
      %v1626 = vadd.f32 %v1137, %v1530
      %v1627 = vadd.f32 %v1140, %v1533
      %v1628 = vadd.f32 %v1145, %v1538
      %v1629 = vadd.f32 %v1148, %v1541
      %v1630 = vadd.f32 %v1153, %v1546
      %v1631 = vadd.f32 %v1156, %v1549
      %v1632 = vadd.f32 %v1161, %v1554
      %v1633 = vadd.f32 %v1164, %v1557
      %v1634 = vadd.f32 %v1169, %v1562
      %v1635 = vadd.f32 %v1172, %v1565
      %v1636 = vadd.f32 %v1177, %v1570
      %v1637 = vadd.f32 %v1180, %v1573
      %v1638 = vadd.f32 %v1185, %v1578
      %v1639 = vadd.f32 %v1188, %v1581
      %v1640 = vadd.f32 %v1193, %v1586
      %v1641 = vadd.f32 %v1196, %v1589
      %v1642 = vadd.f32 %v1201, %v1594
      %v1643 = vadd.f32 %v1204, %v1597
      %v1644 = vadd.f32 %v1209, %v1602
      %v1645 = vadd.f32 %v1212, %v1605
      %v1646 = vadd.f32 %v1217, %v1610
      %v1647 = vadd.f32 %v1220, %v1613
      %s1648 = scalar_lea.vmem %s211, 6
      %v1649 = vld [vmem:[%s1648] sm:$0x3]
      %v1652 = vunpack.c.l.b16 %v273
      %v1653 = vunpack.c.l.b16 %v274
      %v1654 = vpack.c.b16 %v1653, %v1652
      %v1656 = vsel %vm717, %v1654, 0
      %v1659 = vsel %vm766, %v1649, 0
      %1661 = vmatprep.subr.bf16.mxu0 0
      %1662 = vmatpush1.bf16.msra.mxu0 %v1659
      %1663 = vmatprep.subr.bf16.mxu0 0
      %1664 = vmatpush1.bf16.msra.mxu0 0
      %1665 = vmatprep.subr.bf16.mxu0 0
      %1666 = vmatpush1.bf16.msra.mxu0 0
      %1667 = vmatprep.subr.bf16.mxu0 0
      %1668 = vmatpush1.bf16.msra.mxu0 0
      %1669 = vmatprep.subr.bf16.mxu0 0
      %1670 = vmatpush1.bf16.msra.mxu0 0
      %1671 = vmatprep.subr.bf16.mxu0 0
      %1672 = vmatpush1.bf16.msra.mxu0 0
      %1673 = vmatprep.subr.bf16.mxu0 0
      %1674 = vmatpush1.bf16.msra.mxu0 0
      %1675 = vmatprep.subr.bf16.mxu0 0
      %1676 = vmatpush1.bf16.msra.mxu0 0
      %1677 = vmatprep.subr.bf16.mxu0 0
      %1678 = vmatpush1.bf16.msra.mxu0 0
      %1679 = vmatprep.subr.bf16.mxu0 0
      %1680 = vmatpush1.bf16.msra.mxu0 0
      %1681 = vmatprep.subr.bf16.mxu0 0
      %1682 = vmatpush1.bf16.msra.mxu0 0
      %1683 = vmatprep.subr.bf16.mxu0 0
      %1684 = vmatpush1.bf16.msra.mxu0 0
      %1685 = vmatprep.subr.bf16.mxu0 0
      %1686 = vmatpush1.bf16.msra.mxu0 0
      %1687 = vmatprep.subr.bf16.mxu0 0
      %1688 = vmatpush1.bf16.msra.mxu0 0
      %1689 = vmatprep.subr.bf16.mxu0 0
      %1690 = vmatpush1.bf16.msra.mxu0 0
      %1691 = vmatprep.subr.bf16.mxu0 0
      %1692 = vmatpush1.bf16.msra.mxu0 0
      %1693 = vmatprep.mubr.bf16.mxu0 0
      %1694 = vmatmul.mubr.bf16.gmra.mrb[0].mxu0 %v1015
      %v1695 = vpop.f32.mrb[0].mxu0
      %v1696 = vadd.f32 0.0, %v1695
      %v1697 = vpop.f32.mrb[0].mxu0
      %v1698 = vpop.f32.mrb[0].mxu0
      %v1699 = vadd.f32 0.0, %v1698
      %v1700 = vpop.f32.mrb[0].mxu0
      %1701 = vmatprep.mubr.bf16.mxu0 0
      %1702 = vmatmul.mubr.bf16.gmra.mrb[0].mxu0 %v1018
      %v1703 = vpop.f32.mrb[0].mxu0
      %v1704 = vadd.f32 0.0, %v1703
      %v1705 = vpop.f32.mrb[0].mxu0
      %v1706 = vpop.f32.mrb[0].mxu0
      %v1707 = vadd.f32 0.0, %v1706
      %v1708 = vpop.f32.mrb[0].mxu0
      %1709 = vmatprep.mubr.bf16.mxu0 0
      %1710 = vmatmul.mubr.bf16.gmra.mrb[0].mxu0 %v1021
      %v1711 = vpop.f32.mrb[0].mxu0
      %v1712 = vadd.f32 0.0, %v1711
      %v1713 = vpop.f32.mrb[0].mxu0
      %v1714 = vpop.f32.mrb[0].mxu0
      %v1715 = vadd.f32 0.0, %v1714
      %v1716 = vpop.f32.mrb[0].mxu0
      %1717 = vmatprep.mubr.bf16.mxu0 0
      %1718 = vmatmul.mubr.bf16.gmra.mrb[0].mxu0 %v1024
      %v1719 = vpop.f32.mrb[0].mxu0
      %v1720 = vadd.f32 0.0, %v1719
      %v1721 = vpop.f32.mrb[0].mxu0
      %v1722 = vpop.f32.mrb[0].mxu0
      %v1723 = vadd.f32 0.0, %v1722
      %v1724 = vpop.f32.mrb[0].mxu0
      %1725 = vmatprep.mubr.bf16.mxu0 0
      %1726 = vmatmul.mubr.bf16.gmra.mrb[0].mxu0 %v1027
      %v1727 = vpop.f32.mrb[0].mxu0
      %v1728 = vadd.f32 0.0, %v1727
      %v1729 = vpop.f32.mrb[0].mxu0
      %v1730 = vpop.f32.mrb[0].mxu0
      %v1731 = vadd.f32 0.0, %v1730
      %v1732 = vpop.f32.mrb[0].mxu0
      %1733 = vmatprep.mubr.bf16.mxu0 0
      %1734 = vmatmul.mubr.bf16.gmra.mrb[0].mxu0 %v1030
      %v1735 = vpop.f32.mrb[0].mxu0
      %v1736 = vadd.f32 0.0, %v1735
      %v1737 = vpop.f32.mrb[0].mxu0
      %v1738 = vpop.f32.mrb[0].mxu0
      %v1739 = vadd.f32 0.0, %v1738
      %v1740 = vpop.f32.mrb[0].mxu0
      %1741 = vmatprep.mubr.bf16.mxu0 0
      %1742 = vmatmul.mubr.bf16.gmra.mrb[0].mxu0 %v1033
      %v1743 = vpop.f32.mrb[0].mxu0
      %v1744 = vadd.f32 0.0, %v1743
      %v1745 = vpop.f32.mrb[0].mxu0
      %v1746 = vpop.f32.mrb[0].mxu0
      %v1747 = vadd.f32 0.0, %v1746
      %v1748 = vpop.f32.mrb[0].mxu0
      %1749 = vmatprep.mubr.bf16.mxu0 0
      %1750 = vmatmul.mubr.bf16.gmra.mrb[0].mxu0 %v1036
      %v1751 = vpop.f32.mrb[0].mxu0
      %v1752 = vadd.f32 0.0, %v1751
      %v1753 = vpop.f32.mrb[0].mxu0
      %v1754 = vpop.f32.mrb[0].mxu0
      %v1755 = vadd.f32 0.0, %v1754
      %v1756 = vpop.f32.mrb[0].mxu0
      %1757 = vmatprep.mubr.bf16.mxu0 0
      %1758 = vmatmul.mubr.bf16.gmra.mrb[0].mxu0 %v1039
      %v1759 = vpop.f32.mrb[0].mxu0
      %v1760 = vadd.f32 0.0, %v1759
      %v1761 = vpop.f32.mrb[0].mxu0
      %v1762 = vpop.f32.mrb[0].mxu0
      %v1763 = vadd.f32 0.0, %v1762
      %v1764 = vpop.f32.mrb[0].mxu0
      %1765 = vmatprep.mubr.bf16.mxu0 0
      %1766 = vmatmul.mubr.bf16.gmra.mrb[0].mxu0 %v1042
      %v1767 = vpop.f32.mrb[0].mxu0
      %v1768 = vadd.f32 0.0, %v1767
      %v1769 = vpop.f32.mrb[0].mxu0
      %v1770 = vpop.f32.mrb[0].mxu0
      %v1771 = vadd.f32 0.0, %v1770
      %v1772 = vpop.f32.mrb[0].mxu0
      %1773 = vmatprep.mubr.bf16.mxu0 0
      %1774 = vmatmul.mubr.bf16.gmra.mrb[0].mxu0 %v1045
      %v1775 = vpop.f32.mrb[0].mxu0
      %v1776 = vadd.f32 0.0, %v1775
      %v1777 = vpop.f32.mrb[0].mxu0
      %v1778 = vpop.f32.mrb[0].mxu0
      %v1779 = vadd.f32 0.0, %v1778
      %v1780 = vpop.f32.mrb[0].mxu0
      %1781 = vmatprep.mubr.bf16.mxu0 0
      %1782 = vmatmul.mubr.bf16.gmra.mrb[0].mxu0 %v1048
      %v1783 = vpop.f32.mrb[0].mxu0
      %v1784 = vadd.f32 0.0, %v1783
      %v1785 = vpop.f32.mrb[0].mxu0
      %v1786 = vpop.f32.mrb[0].mxu0
      %v1787 = vadd.f32 0.0, %v1786
      %v1788 = vpop.f32.mrb[0].mxu0
      %1789 = vmatprep.mubr.bf16.mxu0 0
      %1790 = vmatmul.mubr.bf16.gmra.mrb[0].mxu0 %v1051
      %v1791 = vpop.f32.mrb[0].mxu0
      %v1792 = vadd.f32 0.0, %v1791
      %v1793 = vpop.f32.mrb[0].mxu0
      %v1794 = vpop.f32.mrb[0].mxu0
      %v1795 = vadd.f32 0.0, %v1794
      %v1796 = vpop.f32.mrb[0].mxu0
      %1797 = vmatprep.mubr.bf16.mxu0 0
      %1798 = vmatmul.mubr.bf16.gmra.mrb[0].mxu0 %v1054
      %v1799 = vpop.f32.mrb[0].mxu0
      %v1800 = vadd.f32 0.0, %v1799
      %v1801 = vpop.f32.mrb[0].mxu0
      %v1802 = vpop.f32.mrb[0].mxu0
      %v1803 = vadd.f32 0.0, %v1802
      %v1804 = vpop.f32.mrb[0].mxu0
      %1805 = vmatprep.mubr.bf16.mxu0 0
      %1806 = vmatmul.mubr.bf16.gmra.mrb[0].mxu0 %v1057
      %v1807 = vpop.f32.mrb[0].mxu0
      %v1808 = vadd.f32 0.0, %v1807
      %v1809 = vpop.f32.mrb[0].mxu0
      %v1810 = vpop.f32.mrb[0].mxu0
      %v1811 = vadd.f32 0.0, %v1810
      %v1812 = vpop.f32.mrb[0].mxu0
      %1813 = vmatprep.mubr.bf16.mxu0 0
      %1814 = vmatmul.mubr.bf16.gmra.mrb[0].mxu0 %v1656
      %v1815 = vpop.f32.mrb[0].mxu0
      %v1816 = vadd.f32 0.0, %v1815
      %v1817 = vpop.f32.mrb[0].mxu0
      %v1818 = vpop.f32.mrb[0].mxu0
      %v1819 = vadd.f32 0.0, %v1818
      %v1820 = vpop.f32.mrb[0].mxu0
      %1821 = vdwg.mxu0
      %v1822 = vadd.f32 %v1616, %v1696
      %v1823 = vadd.f32 %v1617, %v1699
      %v1824 = vadd.f32 %v1618, %v1704
      %v1825 = vadd.f32 %v1619, %v1707
      %v1826 = vadd.f32 %v1620, %v1712
      %v1827 = vadd.f32 %v1621, %v1715
      %v1828 = vadd.f32 %v1622, %v1720
      %v1829 = vadd.f32 %v1623, %v1723
      %v1830 = vadd.f32 %v1624, %v1728
      %v1831 = vadd.f32 %v1625, %v1731
      %v1832 = vadd.f32 %v1626, %v1736
      %v1833 = vadd.f32 %v1627, %v1739
      %v1834 = vadd.f32 %v1628, %v1744
      %v1835 = vadd.f32 %v1629, %v1747
      %v1836 = vadd.f32 %v1630, %v1752
      %v1837 = vadd.f32 %v1631, %v1755
      %v1838 = vadd.f32 %v1632, %v1760
      %v1839 = vadd.f32 %v1633, %v1763
      %v1840 = vadd.f32 %v1634, %v1768
      %v1841 = vadd.f32 %v1635, %v1771
      %v1842 = vadd.f32 %v1636, %v1776
      %v1843 = vadd.f32 %v1637, %v1779
      %v1844 = vadd.f32 %v1638, %v1784
      %v1845 = vadd.f32 %v1639, %v1787
      %v1846 = vadd.f32 %v1640, %v1792
      %v1847 = vadd.f32 %v1641, %v1795
      %v1848 = vadd.f32 %v1642, %v1800
      %v1849 = vadd.f32 %v1643, %v1803
      %v1850 = vadd.f32 %v1644, %v1808
      %v1851 = vadd.f32 %v1645, %v1811
      %v1852 = vadd.f32 %v1646, %v1816
      %v1853 = vadd.f32 %v1647, %v1819
      %v1855 = vshrl.u32 %v273, 16
      %v1857 = vrot.slane %v1855, 4
      %v1858 = vshll.u32 %v273, 16
      %v1860 = vrot.slane %v1858, 5
      %v1861 = vor.u32 %v1857, %v1860
      %v1862 = vrot.slane %v1861, 4
      %v1864 = vshll.u32 %v274, 16
      %v1866 = vrot.slane %v1864, 5
      %v1867 = vsel %vm282, %v1862, %v1866
      %v1868 = vshrl.u32 %v274, 16
      %v1870 = vrot.slane %v1868, 4
      %v1871 = vor.u32 %v1870, %v1866
      %v1872 = vrot.slane %v1871, 4
      %v1874 = vshll.u32 %v275, 16
      %v1876 = vrot.slane %v1874, 5
      %v1877 = vsel %vm282, %v1872, %v1876
      %s1878 = scalar_lea.vmem %s211, 8
      %v1879 = vld [vmem:[%s1878] sm:$0x3]
      %v1880 = vunpack.c.l.b16 %v1867
      %v1881 = vunpack.c.l.b16 %v1877
      %v1882 = vpack.c.b16 %v1881, %v1880
      %v1884 = vsel %vm717, %v1882, 0
      %v1887 = vsel %vm766, %v1879, 0
      %1889 = vmatprep.subr.bf16.mxu0 0
      %1890 = vmatpush1.bf16.msra.mxu0 %v1887
      %1891 = vmatprep.subr.bf16.mxu0 0
      %1892 = vmatpush1.bf16.msra.mxu0 0
      %1893 = vmatprep.subr.bf16.mxu0 0
      %1894 = vmatpush1.bf16.msra.mxu0 0
      %1895 = vmatprep.subr.bf16.mxu0 0
      %1896 = vmatpush1.bf16.msra.mxu0 0
      %1897 = vmatprep.subr.bf16.mxu0 0
      %1898 = vmatpush1.bf16.msra.mxu0 0
      %1899 = vmatprep.subr.bf16.mxu0 0
      %1900 = vmatpush1.bf16.msra.mxu0 0
      %1901 = vmatprep.subr.bf16.mxu0 0
      %1902 = vmatpush1.bf16.msra.mxu0 0
      %1903 = vmatprep.subr.bf16.mxu0 0
      %1904 = vmatpush1.bf16.msra.mxu0 0
      %1905 = vmatprep.subr.bf16.mxu0 0
      %1906 = vmatpush1.bf16.msra.mxu0 0
      %1907 = vmatprep.subr.bf16.mxu0 0
      %1908 = vmatpush1.bf16.msra.mxu0 0
      %1909 = vmatprep.subr.bf16.mxu0 0
      %1910 = vmatpush1.bf16.msra.mxu0 0
      %1911 = vmatprep.subr.bf16.mxu0 0
      %1912 = vmatpush1.bf16.msra.mxu0 0
      %1913 = vmatprep.subr.bf16.mxu0 0
      %1914 = vmatpush1.bf16.msra.mxu0 0
      %1915 = vmatprep.subr.bf16.mxu0 0
      %1916 = vmatpush1.bf16.msra.mxu0 0
      %1917 = vmatprep.subr.bf16.mxu0 0
      %1918 = vmatpush1.bf16.msra.mxu0 0
      %1919 = vmatprep.subr.bf16.mxu0 0
      %1920 = vmatpush1.bf16.msra.mxu0 0
      %1921 = vmatprep.mubr.bf16.mxu0 0
      %1922 = vmatmul.mubr.bf16.gmra.mrb[0].mxu0 %v722
      %v1923 = vpop.f32.mrb[0].mxu0
      %v1924 = vadd.f32 0.0, %v1923
      %v1925 = vpop.f32.mrb[0].mxu0
      %v1926 = vpop.f32.mrb[0].mxu0
      %v1927 = vadd.f32 0.0, %v1926
      %v1928 = vpop.f32.mrb[0].mxu0
      %1929 = vmatprep.mubr.bf16.mxu0 0
      %1930 = vmatmul.mubr.bf16.gmra.mrb[0].mxu0 %v725
      %v1931 = vpop.f32.mrb[0].mxu0
      %v1932 = vadd.f32 0.0, %v1931
      %v1933 = vpop.f32.mrb[0].mxu0
      %v1934 = vpop.f32.mrb[0].mxu0
      %v1935 = vadd.f32 0.0, %v1934
      %v1936 = vpop.f32.mrb[0].mxu0
      %1937 = vmatprep.mubr.bf16.mxu0 0
      %1938 = vmatmul.mubr.bf16.gmra.mrb[0].mxu0 %v728
      %v1939 = vpop.f32.mrb[0].mxu0
      %v1940 = vadd.f32 0.0, %v1939
      %v1941 = vpop.f32.mrb[0].mxu0
      %v1942 = vpop.f32.mrb[0].mxu0
      %v1943 = vadd.f32 0.0, %v1942
      %v1944 = vpop.f32.mrb[0].mxu0
      %1945 = vmatprep.mubr.bf16.mxu0 0
      %1946 = vmatmul.mubr.bf16.gmra.mrb[0].mxu0 %v731
      %v1947 = vpop.f32.mrb[0].mxu0
      %v1948 = vadd.f32 0.0, %v1947
      %v1949 = vpop.f32.mrb[0].mxu0
      %v1950 = vpop.f32.mrb[0].mxu0
      %v1951 = vadd.f32 0.0, %v1950
      %v1952 = vpop.f32.mrb[0].mxu0
      %1953 = vmatprep.mubr.bf16.mxu0 0
      %1954 = vmatmul.mubr.bf16.gmra.mrb[0].mxu0 %v734
      %v1955 = vpop.f32.mrb[0].mxu0
      %v1956 = vadd.f32 0.0, %v1955
      %v1957 = vpop.f32.mrb[0].mxu0
      %v1958 = vpop.f32.mrb[0].mxu0
      %v1959 = vadd.f32 0.0, %v1958
      %v1960 = vpop.f32.mrb[0].mxu0
      %1961 = vmatprep.mubr.bf16.mxu0 0
      %1962 = vmatmul.mubr.bf16.gmra.mrb[0].mxu0 %v737
      %v1963 = vpop.f32.mrb[0].mxu0
      %v1964 = vadd.f32 0.0, %v1963
      %v1965 = vpop.f32.mrb[0].mxu0
      %v1966 = vpop.f32.mrb[0].mxu0
      %v1967 = vadd.f32 0.0, %v1966
      %v1968 = vpop.f32.mrb[0].mxu0
      %1969 = vmatprep.mubr.bf16.mxu0 0
      %1970 = vmatmul.mubr.bf16.gmra.mrb[0].mxu0 %v740
      %v1971 = vpop.f32.mrb[0].mxu0
      %v1972 = vadd.f32 0.0, %v1971
      %v1973 = vpop.f32.mrb[0].mxu0
      %v1974 = vpop.f32.mrb[0].mxu0
      %v1975 = vadd.f32 0.0, %v1974
      %v1976 = vpop.f32.mrb[0].mxu0
      %1977 = vmatprep.mubr.bf16.mxu0 0
      %1978 = vmatmul.mubr.bf16.gmra.mrb[0].mxu0 %v743
      %v1979 = vpop.f32.mrb[0].mxu0
      %v1980 = vadd.f32 0.0, %v1979
      %v1981 = vpop.f32.mrb[0].mxu0
      %v1982 = vpop.f32.mrb[0].mxu0
      %v1983 = vadd.f32 0.0, %v1982
      %v1984 = vpop.f32.mrb[0].mxu0
      %1985 = vmatprep.mubr.bf16.mxu0 0
      %1986 = vmatmul.mubr.bf16.gmra.mrb[0].mxu0 %v746
      %v1987 = vpop.f32.mrb[0].mxu0
      %v1988 = vadd.f32 0.0, %v1987
      %v1989 = vpop.f32.mrb[0].mxu0
      %v1990 = vpop.f32.mrb[0].mxu0
      %v1991 = vadd.f32 0.0, %v1990
      %v1992 = vpop.f32.mrb[0].mxu0
      %1993 = vmatprep.mubr.bf16.mxu0 0
      %1994 = vmatmul.mubr.bf16.gmra.mrb[0].mxu0 %v749
      %v1995 = vpop.f32.mrb[0].mxu0
      %v1996 = vadd.f32 0.0, %v1995
      %v1997 = vpop.f32.mrb[0].mxu0
      %v1998 = vpop.f32.mrb[0].mxu0
      %v1999 = vadd.f32 0.0, %v1998
      %v2000 = vpop.f32.mrb[0].mxu0
      %2001 = vmatprep.mubr.bf16.mxu0 0
      %2002 = vmatmul.mubr.bf16.gmra.mrb[0].mxu0 %v752
      %v2003 = vpop.f32.mrb[0].mxu0
      %v2004 = vadd.f32 0.0, %v2003
      %v2005 = vpop.f32.mrb[0].mxu0
      %v2006 = vpop.f32.mrb[0].mxu0
      %v2007 = vadd.f32 0.0, %v2006
      %v2008 = vpop.f32.mrb[0].mxu0
      %2009 = vmatprep.mubr.bf16.mxu0 0
      %2010 = vmatmul.mubr.bf16.gmra.mrb[0].mxu0 %v755
      %v2011 = vpop.f32.mrb[0].mxu0
      %v2012 = vadd.f32 0.0, %v2011
      %v2013 = vpop.f32.mrb[0].mxu0
      %v2014 = vpop.f32.mrb[0].mxu0
      %v2015 = vadd.f32 0.0, %v2014
      %v2016 = vpop.f32.mrb[0].mxu0
      %2017 = vmatprep.mubr.bf16.mxu0 0
      %2018 = vmatmul.mubr.bf16.gmra.mrb[0].mxu0 %v758
      %v2019 = vpop.f32.mrb[0].mxu0
      %v2020 = vadd.f32 0.0, %v2019
      %v2021 = vpop.f32.mrb[0].mxu0
      %v2022 = vpop.f32.mrb[0].mxu0
      %v2023 = vadd.f32 0.0, %v2022
      %v2024 = vpop.f32.mrb[0].mxu0
      %2025 = vmatprep.mubr.bf16.mxu0 0
      %2026 = vmatmul.mubr.bf16.gmra.mrb[0].mxu0 %v761
      %v2027 = vpop.f32.mrb[0].mxu0
      %v2028 = vadd.f32 0.0, %v2027
      %v2029 = vpop.f32.mrb[0].mxu0
      %v2030 = vpop.f32.mrb[0].mxu0
      %v2031 = vadd.f32 0.0, %v2030
      %v2032 = vpop.f32.mrb[0].mxu0
      %2033 = vmatprep.mubr.bf16.mxu0 0
      %2034 = vmatmul.mubr.bf16.gmra.mrb[0].mxu0 %v764
      %v2035 = vpop.f32.mrb[0].mxu0
      %v2036 = vadd.f32 0.0, %v2035
      %v2037 = vpop.f32.mrb[0].mxu0
      %v2038 = vpop.f32.mrb[0].mxu0
      %v2039 = vadd.f32 0.0, %v2038
      %v2040 = vpop.f32.mrb[0].mxu0
      %2041 = vmatprep.mubr.bf16.mxu0 0
      %2042 = vmatmul.mubr.bf16.gmra.mrb[0].mxu0 %v1884
      %v2043 = vpop.f32.mrb[0].mxu0
      %v2044 = vadd.f32 0.0, %v2043
      %v2045 = vpop.f32.mrb[0].mxu0
      %v2046 = vpop.f32.mrb[0].mxu0
      %v2047 = vadd.f32 0.0, %v2046
      %v2048 = vpop.f32.mrb[0].mxu0
      %2049 = vdwg.mxu0
      %v2050 = vadd.f32 %v1822, %v1924
      %v2051 = vadd.f32 %v1823, %v1927
      %v2052 = vadd.f32 %v1824, %v1932
      %v2053 = vadd.f32 %v1825, %v1935
      %v2054 = vadd.f32 %v1826, %v1940
      %v2055 = vadd.f32 %v1827, %v1943
      %v2056 = vadd.f32 %v1828, %v1948
      %v2057 = vadd.f32 %v1829, %v1951
      %v2058 = vadd.f32 %v1830, %v1956
      %v2059 = vadd.f32 %v1831, %v1959
      %v2060 = vadd.f32 %v1832, %v1964
      %v2061 = vadd.f32 %v1833, %v1967
      %v2062 = vadd.f32 %v1834, %v1972
      %v2063 = vadd.f32 %v1835, %v1975
      %v2064 = vadd.f32 %v1836, %v1980
      %v2065 = vadd.f32 %v1837, %v1983
      %v2066 = vadd.f32 %v1838, %v1988
      %v2067 = vadd.f32 %v1839, %v1991
      %v2068 = vadd.f32 %v1840, %v1996
      %v2069 = vadd.f32 %v1841, %v1999
      %v2070 = vadd.f32 %v1842, %v2004
      %v2071 = vadd.f32 %v1843, %v2007
      %v2072 = vadd.f32 %v1844, %v2012
      %v2073 = vadd.f32 %v1845, %v2015
      %v2074 = vadd.f32 %v1846, %v2020
      %v2075 = vadd.f32 %v1847, %v2023
      %v2076 = vadd.f32 %v1848, %v2028
      %v2077 = vadd.f32 %v1849, %v2031
      %v2078 = vadd.f32 %v1850, %v2036
      %v2079 = vadd.f32 %v1851, %v2039
      %v2080 = vadd.f32 %v1852, %v2044
      %v2081 = vadd.f32 %v1853, %v2047
      %v2083 = vrot.slane %v273, 5
      %v2084 = vrot.slane %v2083, 4
      %v2085 = vrot.slane %v274, 5
      %v2086 = vsel %vm1241, %v2084, %v2085
      %v2087 = vrot.slane %v2085, 4
      %v2088 = vrot.slane %v275, 5
      %v2089 = vsel %vm1241, %v2087, %v2088
      %s2090 = scalar_lea.vmem %s211, 10
      %v2091 = vld [vmem:[%s2090] sm:$0x3]
      %v2092 = vunpack.c.l.b16 %v2086
      %v2093 = vunpack.c.l.b16 %v2089
      %v2094 = vpack.c.b16 %v2093, %v2092
      %v2096 = vsel %vm717, %v2094, 0
      %v2099 = vsel %vm766, %v2091, 0
      %2101 = vmatprep.subr.bf16.mxu0 0
      %2102 = vmatpush1.bf16.msra.mxu0 %v2099
      %2103 = vmatprep.subr.bf16.mxu0 0
      %2104 = vmatpush1.bf16.msra.mxu0 0
      %2105 = vmatprep.subr.bf16.mxu0 0
      %2106 = vmatpush1.bf16.msra.mxu0 0
      %2107 = vmatprep.subr.bf16.mxu0 0
      %2108 = vmatpush1.bf16.msra.mxu0 0
      %2109 = vmatprep.subr.bf16.mxu0 0
      %2110 = vmatpush1.bf16.msra.mxu0 0
      %2111 = vmatprep.subr.bf16.mxu0 0
      %2112 = vmatpush1.bf16.msra.mxu0 0
      %2113 = vmatprep.subr.bf16.mxu0 0
      %2114 = vmatpush1.bf16.msra.mxu0 0
      %2115 = vmatprep.subr.bf16.mxu0 0
      %2116 = vmatpush1.bf16.msra.mxu0 0
      %2117 = vmatprep.subr.bf16.mxu0 0
      %2118 = vmatpush1.bf16.msra.mxu0 0
      %2119 = vmatprep.subr.bf16.mxu0 0
      %2120 = vmatpush1.bf16.msra.mxu0 0
      %2121 = vmatprep.subr.bf16.mxu0 0
      %2122 = vmatpush1.bf16.msra.mxu0 0
      %2123 = vmatprep.subr.bf16.mxu0 0
      %2124 = vmatpush1.bf16.msra.mxu0 0
      %2125 = vmatprep.subr.bf16.mxu0 0
      %2126 = vmatpush1.bf16.msra.mxu0 0
      %2127 = vmatprep.subr.bf16.mxu0 0
      %2128 = vmatpush1.bf16.msra.mxu0 0
      %2129 = vmatprep.subr.bf16.mxu0 0
      %2130 = vmatpush1.bf16.msra.mxu0 0
      %2131 = vmatprep.subr.bf16.mxu0 0
      %2132 = vmatpush1.bf16.msra.mxu0 0
      %2133 = vmatprep.mubr.bf16.mxu0 0
      %2134 = vmatmul.mubr.bf16.gmra.mrb[0].mxu0 %v1408
      %v2135 = vpop.f32.mrb[0].mxu0
      %v2136 = vadd.f32 0.0, %v2135
      %v2137 = vpop.f32.mrb[0].mxu0
      %v2138 = vpop.f32.mrb[0].mxu0
      %v2139 = vadd.f32 0.0, %v2138
      %v2140 = vpop.f32.mrb[0].mxu0
      %2141 = vmatprep.mubr.bf16.mxu0 0
      %2142 = vmatmul.mubr.bf16.gmra.mrb[0].mxu0 %v1411
      %v2143 = vpop.f32.mrb[0].mxu0
      %v2144 = vadd.f32 0.0, %v2143
      %v2145 = vpop.f32.mrb[0].mxu0
      %v2146 = vpop.f32.mrb[0].mxu0
      %v2147 = vadd.f32 0.0, %v2146
      %v2148 = vpop.f32.mrb[0].mxu0
      %2149 = vmatprep.mubr.bf16.mxu0 0
      %2150 = vmatmul.mubr.bf16.gmra.mrb[0].mxu0 %v1414
      %v2151 = vpop.f32.mrb[0].mxu0
      %v2152 = vadd.f32 0.0, %v2151
      %v2153 = vpop.f32.mrb[0].mxu0
      %v2154 = vpop.f32.mrb[0].mxu0
      %v2155 = vadd.f32 0.0, %v2154
      %v2156 = vpop.f32.mrb[0].mxu0
      %2157 = vmatprep.mubr.bf16.mxu0 0
      %2158 = vmatmul.mubr.bf16.gmra.mrb[0].mxu0 %v1417
      %v2159 = vpop.f32.mrb[0].mxu0
      %v2160 = vadd.f32 0.0, %v2159
      %v2161 = vpop.f32.mrb[0].mxu0
      %v2162 = vpop.f32.mrb[0].mxu0
      %v2163 = vadd.f32 0.0, %v2162
      %v2164 = vpop.f32.mrb[0].mxu0
      %2165 = vmatprep.mubr.bf16.mxu0 0
      %2166 = vmatmul.mubr.bf16.gmra.mrb[0].mxu0 %v1420
      %v2167 = vpop.f32.mrb[0].mxu0
      %v2168 = vadd.f32 0.0, %v2167
      %v2169 = vpop.f32.mrb[0].mxu0
      %v2170 = vpop.f32.mrb[0].mxu0
      %v2171 = vadd.f32 0.0, %v2170
      %v2172 = vpop.f32.mrb[0].mxu0
      %2173 = vmatprep.mubr.bf16.mxu0 0
      %2174 = vmatmul.mubr.bf16.gmra.mrb[0].mxu0 %v1423
      %v2175 = vpop.f32.mrb[0].mxu0
      %v2176 = vadd.f32 0.0, %v2175
      %v2177 = vpop.f32.mrb[0].mxu0
      %v2178 = vpop.f32.mrb[0].mxu0
      %v2179 = vadd.f32 0.0, %v2178
      %v2180 = vpop.f32.mrb[0].mxu0
      %2181 = vmatprep.mubr.bf16.mxu0 0
      %2182 = vmatmul.mubr.bf16.gmra.mrb[0].mxu0 %v1426
      %v2183 = vpop.f32.mrb[0].mxu0
      %v2184 = vadd.f32 0.0, %v2183
      %v2185 = vpop.f32.mrb[0].mxu0
      %v2186 = vpop.f32.mrb[0].mxu0
      %v2187 = vadd.f32 0.0, %v2186
      %v2188 = vpop.f32.mrb[0].mxu0
      %2189 = vmatprep.mubr.bf16.mxu0 0
      %2190 = vmatmul.mubr.bf16.gmra.mrb[0].mxu0 %v1429
      %v2191 = vpop.f32.mrb[0].mxu0
      %v2192 = vadd.f32 0.0, %v2191
      %v2193 = vpop.f32.mrb[0].mxu0
      %v2194 = vpop.f32.mrb[0].mxu0
      %v2195 = vadd.f32 0.0, %v2194
      %v2196 = vpop.f32.mrb[0].mxu0
      %2197 = vmatprep.mubr.bf16.mxu0 0
      %2198 = vmatmul.mubr.bf16.gmra.mrb[0].mxu0 %v1432
      %v2199 = vpop.f32.mrb[0].mxu0
      %v2200 = vadd.f32 0.0, %v2199
      %v2201 = vpop.f32.mrb[0].mxu0
      %v2202 = vpop.f32.mrb[0].mxu0
      %v2203 = vadd.f32 0.0, %v2202
      %v2204 = vpop.f32.mrb[0].mxu0
      %2205 = vmatprep.mubr.bf16.mxu0 0
      %2206 = vmatmul.mubr.bf16.gmra.mrb[0].mxu0 %v1435
      %v2207 = vpop.f32.mrb[0].mxu0
      %v2208 = vadd.f32 0.0, %v2207
      %v2209 = vpop.f32.mrb[0].mxu0
      %v2210 = vpop.f32.mrb[0].mxu0
      %v2211 = vadd.f32 0.0, %v2210
      %v2212 = vpop.f32.mrb[0].mxu0
      %2213 = vmatprep.mubr.bf16.mxu0 0
      %2214 = vmatmul.mubr.bf16.gmra.mrb[0].mxu0 %v1438
      %v2215 = vpop.f32.mrb[0].mxu0
      %v2216 = vadd.f32 0.0, %v2215
      %v2217 = vpop.f32.mrb[0].mxu0
      %v2218 = vpop.f32.mrb[0].mxu0
      %v2219 = vadd.f32 0.0, %v2218
      %v2220 = vpop.f32.mrb[0].mxu0
      %2221 = vmatprep.mubr.bf16.mxu0 0
      %2222 = vmatmul.mubr.bf16.gmra.mrb[0].mxu0 %v1441
      %v2223 = vpop.f32.mrb[0].mxu0
      %v2224 = vadd.f32 0.0, %v2223
      %v2225 = vpop.f32.mrb[0].mxu0
      %v2226 = vpop.f32.mrb[0].mxu0
      %v2227 = vadd.f32 0.0, %v2226
      %v2228 = vpop.f32.mrb[0].mxu0
      %2229 = vmatprep.mubr.bf16.mxu0 0
      %2230 = vmatmul.mubr.bf16.gmra.mrb[0].mxu0 %v1444
      %v2231 = vpop.f32.mrb[0].mxu0
      %v2232 = vadd.f32 0.0, %v2231
      %v2233 = vpop.f32.mrb[0].mxu0
      %v2234 = vpop.f32.mrb[0].mxu0
      %v2235 = vadd.f32 0.0, %v2234
      %v2236 = vpop.f32.mrb[0].mxu0
      %2237 = vmatprep.mubr.bf16.mxu0 0
      %2238 = vmatmul.mubr.bf16.gmra.mrb[0].mxu0 %v1447
      %v2239 = vpop.f32.mrb[0].mxu0
      %v2240 = vadd.f32 0.0, %v2239
      %v2241 = vpop.f32.mrb[0].mxu0
      %v2242 = vpop.f32.mrb[0].mxu0
      %v2243 = vadd.f32 0.0, %v2242
      %v2244 = vpop.f32.mrb[0].mxu0
      %2245 = vmatprep.mubr.bf16.mxu0 0
      %2246 = vmatmul.mubr.bf16.gmra.mrb[0].mxu0 %v1450
      %v2247 = vpop.f32.mrb[0].mxu0
      %v2248 = vadd.f32 0.0, %v2247
      %v2249 = vpop.f32.mrb[0].mxu0
      %v2250 = vpop.f32.mrb[0].mxu0
      %v2251 = vadd.f32 0.0, %v2250
      %v2252 = vpop.f32.mrb[0].mxu0
      %2253 = vmatprep.mubr.bf16.mxu0 0
      %2254 = vmatmul.mubr.bf16.gmra.mrb[0].mxu0 %v2096
      %v2255 = vpop.f32.mrb[0].mxu0
      %v2256 = vadd.f32 0.0, %v2255
      %v2257 = vpop.f32.mrb[0].mxu0
      %v2258 = vpop.f32.mrb[0].mxu0
      %v2259 = vadd.f32 0.0, %v2258
      %v2260 = vpop.f32.mrb[0].mxu0
      %2261 = vdwg.mxu0
      %v2262 = vadd.f32 %v2050, %v2136
      %v2263 = vadd.f32 %v2051, %v2139
      %v2264 = vadd.f32 %v2052, %v2144
      %v2265 = vadd.f32 %v2053, %v2147
      %v2266 = vadd.f32 %v2054, %v2152
      %v2267 = vadd.f32 %v2055, %v2155
      %v2268 = vadd.f32 %v2056, %v2160
      %v2269 = vadd.f32 %v2057, %v2163
      %v2270 = vadd.f32 %v2058, %v2168
      %v2271 = vadd.f32 %v2059, %v2171
      %v2272 = vadd.f32 %v2060, %v2176
      %v2273 = vadd.f32 %v2061, %v2179
      %v2274 = vadd.f32 %v2062, %v2184
      %v2275 = vadd.f32 %v2063, %v2187
      %v2276 = vadd.f32 %v2064, %v2192
      %v2277 = vadd.f32 %v2065, %v2195
      %v2278 = vadd.f32 %v2066, %v2200
      %v2279 = vadd.f32 %v2067, %v2203
      %v2280 = vadd.f32 %v2068, %v2208
      %v2281 = vadd.f32 %v2069, %v2211
      %v2282 = vadd.f32 %v2070, %v2216
      %v2283 = vadd.f32 %v2071, %v2219
      %v2284 = vadd.f32 %v2072, %v2224
      %v2285 = vadd.f32 %v2073, %v2227
      %v2286 = vadd.f32 %v2074, %v2232
      %v2287 = vadd.f32 %v2075, %v2235
      %v2288 = vadd.f32 %v2076, %v2240
      %v2289 = vadd.f32 %v2077, %v2243
      %v2290 = vadd.f32 %v2078, %v2248
      %v2291 = vadd.f32 %v2079, %v2251
      %v2292 = vadd.f32 %v2080, %v2256
      %v2293 = vadd.f32 %v2081, %v2259
      %s2294 = scalar_lea.vmem %s211, 12
      %v2295 = vld [vmem:[%s2294] sm:$0x3]
      %v2298 = vunpack.c.l.b16 %v276
      %v2299 = vunpack.c.l.b16 %v277
      %v2300 = vpack.c.b16 %v2299, %v2298
      %v2302 = vsel %vm717, %v2300, 0
      %v2305 = vsel %vm766, %v2295, 0
      %2307 = vmatprep.subr.bf16.mxu0 0
      %2308 = vmatpush1.bf16.msra.mxu0 %v2305
      %2309 = vmatprep.subr.bf16.mxu0 0
      %2310 = vmatpush1.bf16.msra.mxu0 0
      %2311 = vmatprep.subr.bf16.mxu0 0
      %2312 = vmatpush1.bf16.msra.mxu0 0
      %2313 = vmatprep.subr.bf16.mxu0 0
      %2314 = vmatpush1.bf16.msra.mxu0 0
      %2315 = vmatprep.subr.bf16.mxu0 0
      %2316 = vmatpush1.bf16.msra.mxu0 0
      %2317 = vmatprep.subr.bf16.mxu0 0
      %2318 = vmatpush1.bf16.msra.mxu0 0
      %2319 = vmatprep.subr.bf16.mxu0 0
      %2320 = vmatpush1.bf16.msra.mxu0 0
      %2321 = vmatprep.subr.bf16.mxu0 0
      %2322 = vmatpush1.bf16.msra.mxu0 0
      %2323 = vmatprep.subr.bf16.mxu0 0
      %2324 = vmatpush1.bf16.msra.mxu0 0
      %2325 = vmatprep.subr.bf16.mxu0 0
      %2326 = vmatpush1.bf16.msra.mxu0 0
      %2327 = vmatprep.subr.bf16.mxu0 0
      %2328 = vmatpush1.bf16.msra.mxu0 0
      %2329 = vmatprep.subr.bf16.mxu0 0
      %2330 = vmatpush1.bf16.msra.mxu0 0
      %2331 = vmatprep.subr.bf16.mxu0 0
      %2332 = vmatpush1.bf16.msra.mxu0 0
      %2333 = vmatprep.subr.bf16.mxu0 0
      %2334 = vmatpush1.bf16.msra.mxu0 0
      %2335 = vmatprep.subr.bf16.mxu0 0
      %2336 = vmatpush1.bf16.msra.mxu0 0
      %2337 = vmatprep.subr.bf16.mxu0 0
      %2338 = vmatpush1.bf16.msra.mxu0 0
      %2339 = vmatprep.mubr.bf16.mxu0 0
      %2340 = vmatmul.mubr.bf16.gmra.mrb[0].mxu0 %v1018
      %v2341 = vpop.f32.mrb[0].mxu0
      %v2342 = vadd.f32 0.0, %v2341
      %v2343 = vpop.f32.mrb[0].mxu0
      %v2344 = vpop.f32.mrb[0].mxu0
      %v2345 = vadd.f32 0.0, %v2344
      %v2346 = vpop.f32.mrb[0].mxu0
      %2347 = vmatprep.mubr.bf16.mxu0 0
      %2348 = vmatmul.mubr.bf16.gmra.mrb[0].mxu0 %v1021
      %v2349 = vpop.f32.mrb[0].mxu0
      %v2350 = vadd.f32 0.0, %v2349
      %v2351 = vpop.f32.mrb[0].mxu0
      %v2352 = vpop.f32.mrb[0].mxu0
      %v2353 = vadd.f32 0.0, %v2352
      %v2354 = vpop.f32.mrb[0].mxu0
      %2355 = vmatprep.mubr.bf16.mxu0 0
      %2356 = vmatmul.mubr.bf16.gmra.mrb[0].mxu0 %v1024
      %v2357 = vpop.f32.mrb[0].mxu0
      %v2358 = vadd.f32 0.0, %v2357
      %v2359 = vpop.f32.mrb[0].mxu0
      %v2360 = vpop.f32.mrb[0].mxu0
      %v2361 = vadd.f32 0.0, %v2360
      %v2362 = vpop.f32.mrb[0].mxu0
      %2363 = vmatprep.mubr.bf16.mxu0 0
      %2364 = vmatmul.mubr.bf16.gmra.mrb[0].mxu0 %v1027
      %v2365 = vpop.f32.mrb[0].mxu0
      %v2366 = vadd.f32 0.0, %v2365
      %v2367 = vpop.f32.mrb[0].mxu0
      %v2368 = vpop.f32.mrb[0].mxu0
      %v2369 = vadd.f32 0.0, %v2368
      %v2370 = vpop.f32.mrb[0].mxu0
      %2371 = vmatprep.mubr.bf16.mxu0 0
      %2372 = vmatmul.mubr.bf16.gmra.mrb[0].mxu0 %v1030
      %v2373 = vpop.f32.mrb[0].mxu0
      %v2374 = vadd.f32 0.0, %v2373
      %v2375 = vpop.f32.mrb[0].mxu0
      %v2376 = vpop.f32.mrb[0].mxu0
      %v2377 = vadd.f32 0.0, %v2376
      %v2378 = vpop.f32.mrb[0].mxu0
      %2379 = vmatprep.mubr.bf16.mxu0 0
      %2380 = vmatmul.mubr.bf16.gmra.mrb[0].mxu0 %v1033
      %v2381 = vpop.f32.mrb[0].mxu0
      %v2382 = vadd.f32 0.0, %v2381
      %v2383 = vpop.f32.mrb[0].mxu0
      %v2384 = vpop.f32.mrb[0].mxu0
      %v2385 = vadd.f32 0.0, %v2384
      %v2386 = vpop.f32.mrb[0].mxu0
      %2387 = vmatprep.mubr.bf16.mxu0 0
      %2388 = vmatmul.mubr.bf16.gmra.mrb[0].mxu0 %v1036
      %v2389 = vpop.f32.mrb[0].mxu0
      %v2390 = vadd.f32 0.0, %v2389
      %v2391 = vpop.f32.mrb[0].mxu0
      %v2392 = vpop.f32.mrb[0].mxu0
      %v2393 = vadd.f32 0.0, %v2392
      %v2394 = vpop.f32.mrb[0].mxu0
      %2395 = vmatprep.mubr.bf16.mxu0 0
      %2396 = vmatmul.mubr.bf16.gmra.mrb[0].mxu0 %v1039
      %v2397 = vpop.f32.mrb[0].mxu0
      %v2398 = vadd.f32 0.0, %v2397
      %v2399 = vpop.f32.mrb[0].mxu0
      %v2400 = vpop.f32.mrb[0].mxu0
      %v2401 = vadd.f32 0.0, %v2400
      %v2402 = vpop.f32.mrb[0].mxu0
      %2403 = vmatprep.mubr.bf16.mxu0 0
      %2404 = vmatmul.mubr.bf16.gmra.mrb[0].mxu0 %v1042
      %v2405 = vpop.f32.mrb[0].mxu0
      %v2406 = vadd.f32 0.0, %v2405
      %v2407 = vpop.f32.mrb[0].mxu0
      %v2408 = vpop.f32.mrb[0].mxu0
      %v2409 = vadd.f32 0.0, %v2408
      %v2410 = vpop.f32.mrb[0].mxu0
      %2411 = vmatprep.mubr.bf16.mxu0 0
      %2412 = vmatmul.mubr.bf16.gmra.mrb[0].mxu0 %v1045
      %v2413 = vpop.f32.mrb[0].mxu0
      %v2414 = vadd.f32 0.0, %v2413
      %v2415 = vpop.f32.mrb[0].mxu0
      %v2416 = vpop.f32.mrb[0].mxu0
      %v2417 = vadd.f32 0.0, %v2416
      %v2418 = vpop.f32.mrb[0].mxu0
      %2419 = vmatprep.mubr.bf16.mxu0 0
      %2420 = vmatmul.mubr.bf16.gmra.mrb[0].mxu0 %v1048
      %v2421 = vpop.f32.mrb[0].mxu0
      %v2422 = vadd.f32 0.0, %v2421
      %v2423 = vpop.f32.mrb[0].mxu0
      %v2424 = vpop.f32.mrb[0].mxu0
      %v2425 = vadd.f32 0.0, %v2424
      %v2426 = vpop.f32.mrb[0].mxu0
      %2427 = vmatprep.mubr.bf16.mxu0 0
      %2428 = vmatmul.mubr.bf16.gmra.mrb[0].mxu0 %v1051
      %v2429 = vpop.f32.mrb[0].mxu0
      %v2430 = vadd.f32 0.0, %v2429
      %v2431 = vpop.f32.mrb[0].mxu0
      %v2432 = vpop.f32.mrb[0].mxu0
      %v2433 = vadd.f32 0.0, %v2432
      %v2434 = vpop.f32.mrb[0].mxu0
      %2435 = vmatprep.mubr.bf16.mxu0 0
      %2436 = vmatmul.mubr.bf16.gmra.mrb[0].mxu0 %v1054
      %v2437 = vpop.f32.mrb[0].mxu0
      %v2438 = vadd.f32 0.0, %v2437
      %v2439 = vpop.f32.mrb[0].mxu0
      %v2440 = vpop.f32.mrb[0].mxu0
      %v2441 = vadd.f32 0.0, %v2440
      %v2442 = vpop.f32.mrb[0].mxu0
      %2443 = vmatprep.mubr.bf16.mxu0 0
      %2444 = vmatmul.mubr.bf16.gmra.mrb[0].mxu0 %v1057
      %v2445 = vpop.f32.mrb[0].mxu0
      %v2446 = vadd.f32 0.0, %v2445
      %v2447 = vpop.f32.mrb[0].mxu0
      %v2448 = vpop.f32.mrb[0].mxu0
      %v2449 = vadd.f32 0.0, %v2448
      %v2450 = vpop.f32.mrb[0].mxu0
      %2451 = vmatprep.mubr.bf16.mxu0 0
      %2452 = vmatmul.mubr.bf16.gmra.mrb[0].mxu0 %v1656
      %v2453 = vpop.f32.mrb[0].mxu0
      %v2454 = vadd.f32 0.0, %v2453
      %v2455 = vpop.f32.mrb[0].mxu0
      %v2456 = vpop.f32.mrb[0].mxu0
      %v2457 = vadd.f32 0.0, %v2456
      %v2458 = vpop.f32.mrb[0].mxu0
      %2459 = vmatprep.mubr.bf16.mxu0 0
      %2460 = vmatmul.mubr.bf16.gmra.mrb[0].mxu0 %v2302
      %v2461 = vpop.f32.mrb[0].mxu0
      %v2462 = vadd.f32 0.0, %v2461
      %v2463 = vpop.f32.mrb[0].mxu0
      %v2464 = vpop.f32.mrb[0].mxu0
      %v2465 = vadd.f32 0.0, %v2464
      %v2466 = vpop.f32.mrb[0].mxu0
      %2467 = vdwg.mxu0
      %v2468 = vadd.f32 %v2262, %v2342
      %v2469 = vadd.f32 %v2263, %v2345
      %v2470 = vadd.f32 %v2264, %v2350
      %v2471 = vadd.f32 %v2265, %v2353
      %v2472 = vadd.f32 %v2266, %v2358
      %v2473 = vadd.f32 %v2267, %v2361
      %v2474 = vadd.f32 %v2268, %v2366
      %v2475 = vadd.f32 %v2269, %v2369
      %v2476 = vadd.f32 %v2270, %v2374
      %v2477 = vadd.f32 %v2271, %v2377
      %v2478 = vadd.f32 %v2272, %v2382
      %v2479 = vadd.f32 %v2273, %v2385
      %v2480 = vadd.f32 %v2274, %v2390
      %v2481 = vadd.f32 %v2275, %v2393
      %v2482 = vadd.f32 %v2276, %v2398
      %v2483 = vadd.f32 %v2277, %v2401
      %v2484 = vadd.f32 %v2278, %v2406
      %v2485 = vadd.f32 %v2279, %v2409
      %v2486 = vadd.f32 %v2280, %v2414
      %v2487 = vadd.f32 %v2281, %v2417
      %v2488 = vadd.f32 %v2282, %v2422
      %v2489 = vadd.f32 %v2283, %v2425
      %v2490 = vadd.f32 %v2284, %v2430
      %v2491 = vadd.f32 %v2285, %v2433
      %v2492 = vadd.f32 %v2286, %v2438
      %v2493 = vadd.f32 %v2287, %v2441
      %v2494 = vadd.f32 %v2288, %v2446
      %v2495 = vadd.f32 %v2289, %v2449
      %v2496 = vadd.f32 %v2290, %v2454
      %v2497 = vadd.f32 %v2291, %v2457
      %v2498 = vadd.f32 %v2292, %v2462
      %v2499 = vadd.f32 %v2293, %v2465
      %v2501 = vshrl.u32 %v276, 16
      %v2503 = vrot.slane %v2501, 4
      %v2504 = vshll.u32 %v276, 16
      %v2506 = vrot.slane %v2504, 5
      %v2507 = vor.u32 %v2503, %v2506
      %v2508 = vrot.slane %v2507, 4
      %v2510 = vshll.u32 %v277, 16
      %v2512 = vrot.slane %v2510, 5
      %v2513 = vsel %vm282, %v2508, %v2512
      %v2514 = vshrl.u32 %v277, 16
      %v2516 = vrot.slane %v2514, 4
      %v2517 = vor.u32 %v2516, %v2512
      %v2518 = vrot.slane %v2517, 4
      %v2520 = vshll.u32 %v278, 16
      %v2522 = vrot.slane %v2520, 5
      %v2523 = vsel %vm282, %v2518, %v2522
      %s2524 = scalar_lea.vmem %s211, 14
      %v2525 = vld [vmem:[%s2524] sm:$0x3]
      %v2526 = vunpack.c.l.b16 %v2513
      %v2527 = vunpack.c.l.b16 %v2523
      %v2528 = vpack.c.b16 %v2527, %v2526
      %v2530 = vsel %vm717, %v2528, 0
      %v2533 = vsel %vm766, %v2525, 0
      %2535 = vmatprep.subr.bf16.mxu0 0
      %2536 = vmatpush1.bf16.msra.mxu0 %v2533
      %2537 = vmatprep.subr.bf16.mxu0 0
      %2538 = vmatpush1.bf16.msra.mxu0 0
      %2539 = vmatprep.subr.bf16.mxu0 0
      %2540 = vmatpush1.bf16.msra.mxu0 0
      %2541 = vmatprep.subr.bf16.mxu0 0
      %2542 = vmatpush1.bf16.msra.mxu0 0
      %2543 = vmatprep.subr.bf16.mxu0 0
      %2544 = vmatpush1.bf16.msra.mxu0 0
      %2545 = vmatprep.subr.bf16.mxu0 0
      %2546 = vmatpush1.bf16.msra.mxu0 0
      %2547 = vmatprep.subr.bf16.mxu0 0
      %2548 = vmatpush1.bf16.msra.mxu0 0
      %2549 = vmatprep.subr.bf16.mxu0 0
      %2550 = vmatpush1.bf16.msra.mxu0 0
      %2551 = vmatprep.subr.bf16.mxu0 0
      %2552 = vmatpush1.bf16.msra.mxu0 0
      %2553 = vmatprep.subr.bf16.mxu0 0
      %2554 = vmatpush1.bf16.msra.mxu0 0
      %2555 = vmatprep.subr.bf16.mxu0 0
      %2556 = vmatpush1.bf16.msra.mxu0 0
      %2557 = vmatprep.subr.bf16.mxu0 0
      %2558 = vmatpush1.bf16.msra.mxu0 0
      %2559 = vmatprep.subr.bf16.mxu0 0
      %2560 = vmatpush1.bf16.msra.mxu0 0
      %2561 = vmatprep.subr.bf16.mxu0 0
      %2562 = vmatpush1.bf16.msra.mxu0 0
      %2563 = vmatprep.subr.bf16.mxu0 0
      %2564 = vmatpush1.bf16.msra.mxu0 0
      %2565 = vmatprep.subr.bf16.mxu0 0
      %2566 = vmatpush1.bf16.msra.mxu0 0
      %2567 = vmatprep.mubr.bf16.mxu0 0
      %2568 = vmatmul.mubr.bf16.gmra.mrb[0].mxu0 %v725
      %v2569 = vpop.f32.mrb[0].mxu0
      %v2570 = vadd.f32 0.0, %v2569
      %v2571 = vpop.f32.mrb[0].mxu0
      %v2572 = vpop.f32.mrb[0].mxu0
      %v2573 = vadd.f32 0.0, %v2572
      %v2574 = vpop.f32.mrb[0].mxu0
      %2575 = vmatprep.mubr.bf16.mxu0 0
      %2576 = vmatmul.mubr.bf16.gmra.mrb[0].mxu0 %v728
      %v2577 = vpop.f32.mrb[0].mxu0
      %v2578 = vadd.f32 0.0, %v2577
      %v2579 = vpop.f32.mrb[0].mxu0
      %v2580 = vpop.f32.mrb[0].mxu0
      %v2581 = vadd.f32 0.0, %v2580
      %v2582 = vpop.f32.mrb[0].mxu0
      %2583 = vmatprep.mubr.bf16.mxu0 0
      %2584 = vmatmul.mubr.bf16.gmra.mrb[0].mxu0 %v731
      %v2585 = vpop.f32.mrb[0].mxu0
      %v2586 = vadd.f32 0.0, %v2585
      %v2587 = vpop.f32.mrb[0].mxu0
      %v2588 = vpop.f32.mrb[0].mxu0
      %v2589 = vadd.f32 0.0, %v2588
      %v2590 = vpop.f32.mrb[0].mxu0
      %2591 = vmatprep.mubr.bf16.mxu0 0
      %2592 = vmatmul.mubr.bf16.gmra.mrb[0].mxu0 %v734
      %v2593 = vpop.f32.mrb[0].mxu0
      %v2594 = vadd.f32 0.0, %v2593
      %v2595 = vpop.f32.mrb[0].mxu0
      %v2596 = vpop.f32.mrb[0].mxu0
      %v2597 = vadd.f32 0.0, %v2596
      %v2598 = vpop.f32.mrb[0].mxu0
      %2599 = vmatprep.mubr.bf16.mxu0 0
      %2600 = vmatmul.mubr.bf16.gmra.mrb[0].mxu0 %v737
      %v2601 = vpop.f32.mrb[0].mxu0
      %v2602 = vadd.f32 0.0, %v2601
      %v2603 = vpop.f32.mrb[0].mxu0
      %v2604 = vpop.f32.mrb[0].mxu0
      %v2605 = vadd.f32 0.0, %v2604
      %v2606 = vpop.f32.mrb[0].mxu0
      %2607 = vmatprep.mubr.bf16.mxu0 0
      %2608 = vmatmul.mubr.bf16.gmra.mrb[0].mxu0 %v740
      %v2609 = vpop.f32.mrb[0].mxu0
      %v2610 = vadd.f32 0.0, %v2609
      %v2611 = vpop.f32.mrb[0].mxu0
      %v2612 = vpop.f32.mrb[0].mxu0
      %v2613 = vadd.f32 0.0, %v2612
      %v2614 = vpop.f32.mrb[0].mxu0
      %2615 = vmatprep.mubr.bf16.mxu0 0
      %2616 = vmatmul.mubr.bf16.gmra.mrb[0].mxu0 %v743
      %v2617 = vpop.f32.mrb[0].mxu0
      %v2618 = vadd.f32 0.0, %v2617
      %v2619 = vpop.f32.mrb[0].mxu0
      %v2620 = vpop.f32.mrb[0].mxu0
      %v2621 = vadd.f32 0.0, %v2620
      %v2622 = vpop.f32.mrb[0].mxu0
      %2623 = vmatprep.mubr.bf16.mxu0 0
      %2624 = vmatmul.mubr.bf16.gmra.mrb[0].mxu0 %v746
      %v2625 = vpop.f32.mrb[0].mxu0
      %v2626 = vadd.f32 0.0, %v2625
      %v2627 = vpop.f32.mrb[0].mxu0
      %v2628 = vpop.f32.mrb[0].mxu0
      %v2629 = vadd.f32 0.0, %v2628
      %v2630 = vpop.f32.mrb[0].mxu0
      %2631 = vmatprep.mubr.bf16.mxu0 0
      %2632 = vmatmul.mubr.bf16.gmra.mrb[0].mxu0 %v749
      %v2633 = vpop.f32.mrb[0].mxu0
      %v2634 = vadd.f32 0.0, %v2633
      %v2635 = vpop.f32.mrb[0].mxu0
      %v2636 = vpop.f32.mrb[0].mxu0
      %v2637 = vadd.f32 0.0, %v2636
      %v2638 = vpop.f32.mrb[0].mxu0
      %2639 = vmatprep.mubr.bf16.mxu0 0
      %2640 = vmatmul.mubr.bf16.gmra.mrb[0].mxu0 %v752
      %v2641 = vpop.f32.mrb[0].mxu0
      %v2642 = vadd.f32 0.0, %v2641
      %v2643 = vpop.f32.mrb[0].mxu0
      %v2644 = vpop.f32.mrb[0].mxu0
      %v2645 = vadd.f32 0.0, %v2644
      %v2646 = vpop.f32.mrb[0].mxu0
      %2647 = vmatprep.mubr.bf16.mxu0 0
      %2648 = vmatmul.mubr.bf16.gmra.mrb[0].mxu0 %v755
      %v2649 = vpop.f32.mrb[0].mxu0
      %v2650 = vadd.f32 0.0, %v2649
      %v2651 = vpop.f32.mrb[0].mxu0
      %v2652 = vpop.f32.mrb[0].mxu0
      %v2653 = vadd.f32 0.0, %v2652
      %v2654 = vpop.f32.mrb[0].mxu0
      %2655 = vmatprep.mubr.bf16.mxu0 0
      %2656 = vmatmul.mubr.bf16.gmra.mrb[0].mxu0 %v758
      %v2657 = vpop.f32.mrb[0].mxu0
      %v2658 = vadd.f32 0.0, %v2657
      %v2659 = vpop.f32.mrb[0].mxu0
      %v2660 = vpop.f32.mrb[0].mxu0
      %v2661 = vadd.f32 0.0, %v2660
      %v2662 = vpop.f32.mrb[0].mxu0
      %2663 = vmatprep.mubr.bf16.mxu0 0
      %2664 = vmatmul.mubr.bf16.gmra.mrb[0].mxu0 %v761
      %v2665 = vpop.f32.mrb[0].mxu0
      %v2666 = vadd.f32 0.0, %v2665
      %v2667 = vpop.f32.mrb[0].mxu0
      %v2668 = vpop.f32.mrb[0].mxu0
      %v2669 = vadd.f32 0.0, %v2668
      %v2670 = vpop.f32.mrb[0].mxu0
      %2671 = vmatprep.mubr.bf16.mxu0 0
      %2672 = vmatmul.mubr.bf16.gmra.mrb[0].mxu0 %v764
      %v2673 = vpop.f32.mrb[0].mxu0
      %v2674 = vadd.f32 0.0, %v2673
      %v2675 = vpop.f32.mrb[0].mxu0
      %v2676 = vpop.f32.mrb[0].mxu0
      %v2677 = vadd.f32 0.0, %v2676
      %v2678 = vpop.f32.mrb[0].mxu0
      %2679 = vmatprep.mubr.bf16.mxu0 0
      %2680 = vmatmul.mubr.bf16.gmra.mrb[0].mxu0 %v1884
      %v2681 = vpop.f32.mrb[0].mxu0
      %v2682 = vadd.f32 0.0, %v2681
      %v2683 = vpop.f32.mrb[0].mxu0
      %v2684 = vpop.f32.mrb[0].mxu0
      %v2685 = vadd.f32 0.0, %v2684
      %v2686 = vpop.f32.mrb[0].mxu0
      %2687 = vmatprep.mubr.bf16.mxu0 0
      %2688 = vmatmul.mubr.bf16.gmra.mrb[0].mxu0 %v2530
      %v2689 = vpop.f32.mrb[0].mxu0
      %v2690 = vadd.f32 0.0, %v2689
      %v2691 = vpop.f32.mrb[0].mxu0
      %v2692 = vpop.f32.mrb[0].mxu0
      %v2693 = vadd.f32 0.0, %v2692
      %v2694 = vpop.f32.mrb[0].mxu0
      %2695 = vdwg.mxu0
      %v2696 = vadd.f32 %v2468, %v2570
      %v2697 = vadd.f32 %v2469, %v2573
      %v2698 = vadd.f32 %v2470, %v2578
      %v2699 = vadd.f32 %v2471, %v2581
      %v2700 = vadd.f32 %v2472, %v2586
      %v2701 = vadd.f32 %v2473, %v2589
      %v2702 = vadd.f32 %v2474, %v2594
      %v2703 = vadd.f32 %v2475, %v2597
      %v2704 = vadd.f32 %v2476, %v2602
      %v2705 = vadd.f32 %v2477, %v2605
      %v2706 = vadd.f32 %v2478, %v2610
      %v2707 = vadd.f32 %v2479, %v2613
      %v2708 = vadd.f32 %v2480, %v2618
      %v2709 = vadd.f32 %v2481, %v2621
      %v2710 = vadd.f32 %v2482, %v2626
      %v2711 = vadd.f32 %v2483, %v2629
      %v2712 = vadd.f32 %v2484, %v2634
      %v2713 = vadd.f32 %v2485, %v2637
      %v2714 = vadd.f32 %v2486, %v2642
      %v2715 = vadd.f32 %v2487, %v2645
      %v2716 = vadd.f32 %v2488, %v2650
      %v2717 = vadd.f32 %v2489, %v2653
      %v2718 = vadd.f32 %v2490, %v2658
      %v2719 = vadd.f32 %v2491, %v2661
      %v2720 = vadd.f32 %v2492, %v2666
      %v2721 = vadd.f32 %v2493, %v2669
      %v2722 = vadd.f32 %v2494, %v2674
      %v2723 = vadd.f32 %v2495, %v2677
      %v2724 = vadd.f32 %v2496, %v2682
      %v2725 = vadd.f32 %v2497, %v2685
      %v2726 = vadd.f32 %v2498, %v2690
      %v2727 = vadd.f32 %v2499, %v2693
      %v2729 = vrot.slane %v276, 5
      %v2730 = vrot.slane %v2729, 4
      %v2731 = vrot.slane %v277, 5
      %v2732 = vsel %vm1241, %v2730, %v2731
      %v2733 = vrot.slane %v2731, 4
      %v2734 = vrot.slane %v278, 5
      %v2735 = vsel %vm1241, %v2733, %v2734
      %s2736 = scalar_lea.vmem %s211, 16
      %v2737 = vld [vmem:[%s2736] sm:$0x3]
      %v2738 = vunpack.c.l.b16 %v2732
      %v2739 = vunpack.c.l.b16 %v2735
      %v2740 = vpack.c.b16 %v2739, %v2738
      %v2742 = vsel %vm717, %v2740, 0
      %v2745 = vsel %vm766, %v2737, 0
      %2747 = vmatprep.subr.bf16.mxu0 0
      %2748 = vmatpush1.bf16.msra.mxu0 %v2745
      %2749 = vmatprep.subr.bf16.mxu0 0
      %2750 = vmatpush1.bf16.msra.mxu0 0
      %2751 = vmatprep.subr.bf16.mxu0 0
      %2752 = vmatpush1.bf16.msra.mxu0 0
      %2753 = vmatprep.subr.bf16.mxu0 0
      %2754 = vmatpush1.bf16.msra.mxu0 0
      %2755 = vmatprep.subr.bf16.mxu0 0
      %2756 = vmatpush1.bf16.msra.mxu0 0
      %2757 = vmatprep.subr.bf16.mxu0 0
      %2758 = vmatpush1.bf16.msra.mxu0 0
      %2759 = vmatprep.subr.bf16.mxu0 0
      %2760 = vmatpush1.bf16.msra.mxu0 0
      %2761 = vmatprep.subr.bf16.mxu0 0
      %2762 = vmatpush1.bf16.msra.mxu0 0
      %2763 = vmatprep.subr.bf16.mxu0 0
      %2764 = vmatpush1.bf16.msra.mxu0 0
      %2765 = vmatprep.subr.bf16.mxu0 0
      %2766 = vmatpush1.bf16.msra.mxu0 0
      %2767 = vmatprep.subr.bf16.mxu0 0
      %2768 = vmatpush1.bf16.msra.mxu0 0
      %2769 = vmatprep.subr.bf16.mxu0 0
      %2770 = vmatpush1.bf16.msra.mxu0 0
      %2771 = vmatprep.subr.bf16.mxu0 0
      %2772 = vmatpush1.bf16.msra.mxu0 0
      %2773 = vmatprep.subr.bf16.mxu0 0
      %2774 = vmatpush1.bf16.msra.mxu0 0
      %2775 = vmatprep.subr.bf16.mxu0 0
      %2776 = vmatpush1.bf16.msra.mxu0 0
      %2777 = vmatprep.subr.bf16.mxu0 0
      %2778 = vmatpush1.bf16.msra.mxu0 0
      %2779 = vmatprep.mubr.bf16.mxu0 0
      %2780 = vmatmul.mubr.bf16.gmra.mrb[0].mxu0 %v1411
      %v2781 = vpop.f32.mrb[0].mxu0
      %v2782 = vadd.f32 0.0, %v2781
      %v2783 = vpop.f32.mrb[0].mxu0
      %v2784 = vpop.f32.mrb[0].mxu0
      %v2785 = vadd.f32 0.0, %v2784
      %v2786 = vpop.f32.mrb[0].mxu0
      %2787 = vmatprep.mubr.bf16.mxu0 0
      %2788 = vmatmul.mubr.bf16.gmra.mrb[0].mxu0 %v1414
      %v2789 = vpop.f32.mrb[0].mxu0
      %v2790 = vadd.f32 0.0, %v2789
      %v2791 = vpop.f32.mrb[0].mxu0
      %v2792 = vpop.f32.mrb[0].mxu0
      %v2793 = vadd.f32 0.0, %v2792
      %v2794 = vpop.f32.mrb[0].mxu0
      %2795 = vmatprep.mubr.bf16.mxu0 0
      %2796 = vmatmul.mubr.bf16.gmra.mrb[0].mxu0 %v1417
      %v2797 = vpop.f32.mrb[0].mxu0
      %v2798 = vadd.f32 0.0, %v2797
      %v2799 = vpop.f32.mrb[0].mxu0
      %v2800 = vpop.f32.mrb[0].mxu0
      %v2801 = vadd.f32 0.0, %v2800
      %v2802 = vpop.f32.mrb[0].mxu0
      %2803 = vmatprep.mubr.bf16.mxu0 0
      %2804 = vmatmul.mubr.bf16.gmra.mrb[0].mxu0 %v1420
      %v2805 = vpop.f32.mrb[0].mxu0
      %v2806 = vadd.f32 0.0, %v2805
      %v2807 = vpop.f32.mrb[0].mxu0
      %v2808 = vpop.f32.mrb[0].mxu0
      %v2809 = vadd.f32 0.0, %v2808
      %v2810 = vpop.f32.mrb[0].mxu0
      %2811 = vmatprep.mubr.bf16.mxu0 0
      %2812 = vmatmul.mubr.bf16.gmra.mrb[0].mxu0 %v1423
      %v2813 = vpop.f32.mrb[0].mxu0
      %v2814 = vadd.f32 0.0, %v2813
      %v2815 = vpop.f32.mrb[0].mxu0
      %v2816 = vpop.f32.mrb[0].mxu0
      %v2817 = vadd.f32 0.0, %v2816
      %v2818 = vpop.f32.mrb[0].mxu0
      %2819 = vmatprep.mubr.bf16.mxu0 0
      %2820 = vmatmul.mubr.bf16.gmra.mrb[0].mxu0 %v1426
      %v2821 = vpop.f32.mrb[0].mxu0
      %v2822 = vadd.f32 0.0, %v2821
      %v2823 = vpop.f32.mrb[0].mxu0
      %v2824 = vpop.f32.mrb[0].mxu0
      %v2825 = vadd.f32 0.0, %v2824
      %v2826 = vpop.f32.mrb[0].mxu0
      %2827 = vmatprep.mubr.bf16.mxu0 0
      %2828 = vmatmul.mubr.bf16.gmra.mrb[0].mxu0 %v1429
      %v2829 = vpop.f32.mrb[0].mxu0
      %v2830 = vadd.f32 0.0, %v2829
      %v2831 = vpop.f32.mrb[0].mxu0
      %v2832 = vpop.f32.mrb[0].mxu0
      %v2833 = vadd.f32 0.0, %v2832
      %v2834 = vpop.f32.mrb[0].mxu0
      %2835 = vmatprep.mubr.bf16.mxu0 0
      %2836 = vmatmul.mubr.bf16.gmra.mrb[0].mxu0 %v1432
      %v2837 = vpop.f32.mrb[0].mxu0
      %v2838 = vadd.f32 0.0, %v2837
      %v2839 = vpop.f32.mrb[0].mxu0
      %v2840 = vpop.f32.mrb[0].mxu0
      %v2841 = vadd.f32 0.0, %v2840
      %v2842 = vpop.f32.mrb[0].mxu0
      %2843 = vmatprep.mubr.bf16.mxu0 0
      %2844 = vmatmul.mubr.bf16.gmra.mrb[0].mxu0 %v1435
      %v2845 = vpop.f32.mrb[0].mxu0
      %v2846 = vadd.f32 0.0, %v2845
      %v2847 = vpop.f32.mrb[0].mxu0
      %v2848 = vpop.f32.mrb[0].mxu0
      %v2849 = vadd.f32 0.0, %v2848
      %v2850 = vpop.f32.mrb[0].mxu0
      %2851 = vmatprep.mubr.bf16.mxu0 0
      %2852 = vmatmul.mubr.bf16.gmra.mrb[0].mxu0 %v1438
      %v2853 = vpop.f32.mrb[0].mxu0
      %v2854 = vadd.f32 0.0, %v2853
      %v2855 = vpop.f32.mrb[0].mxu0
      %v2856 = vpop.f32.mrb[0].mxu0
      %v2857 = vadd.f32 0.0, %v2856
      %v2858 = vpop.f32.mrb[0].mxu0
      %2859 = vmatprep.mubr.bf16.mxu0 0
      %2860 = vmatmul.mubr.bf16.gmra.mrb[0].mxu0 %v1441
      %v2861 = vpop.f32.mrb[0].mxu0
      %v2862 = vadd.f32 0.0, %v2861
      %v2863 = vpop.f32.mrb[0].mxu0
      %v2864 = vpop.f32.mrb[0].mxu0
      %v2865 = vadd.f32 0.0, %v2864
      %v2866 = vpop.f32.mrb[0].mxu0
      %2867 = vmatprep.mubr.bf16.mxu0 0
      %2868 = vmatmul.mubr.bf16.gmra.mrb[0].mxu0 %v1444
      %v2869 = vpop.f32.mrb[0].mxu0
      %v2870 = vadd.f32 0.0, %v2869
      %v2871 = vpop.f32.mrb[0].mxu0
      %v2872 = vpop.f32.mrb[0].mxu0
      %v2873 = vadd.f32 0.0, %v2872
      %v2874 = vpop.f32.mrb[0].mxu0
      %2875 = vmatprep.mubr.bf16.mxu0 0
      %2876 = vmatmul.mubr.bf16.gmra.mrb[0].mxu0 %v1447
      %v2877 = vpop.f32.mrb[0].mxu0
      %v2878 = vadd.f32 0.0, %v2877
      %v2879 = vpop.f32.mrb[0].mxu0
      %v2880 = vpop.f32.mrb[0].mxu0
      %v2881 = vadd.f32 0.0, %v2880
      %v2882 = vpop.f32.mrb[0].mxu0
      %2883 = vmatprep.mubr.bf16.mxu0 0
      %2884 = vmatmul.mubr.bf16.gmra.mrb[0].mxu0 %v1450
      %v2885 = vpop.f32.mrb[0].mxu0
      %v2886 = vadd.f32 0.0, %v2885
      %v2887 = vpop.f32.mrb[0].mxu0
      %v2888 = vpop.f32.mrb[0].mxu0
      %v2889 = vadd.f32 0.0, %v2888
      %v2890 = vpop.f32.mrb[0].mxu0
      %2891 = vmatprep.mubr.bf16.mxu0 0
      %2892 = vmatmul.mubr.bf16.gmra.mrb[0].mxu0 %v2096
      %v2893 = vpop.f32.mrb[0].mxu0
      %v2894 = vadd.f32 0.0, %v2893
      %v2895 = vpop.f32.mrb[0].mxu0
      %v2896 = vpop.f32.mrb[0].mxu0
      %v2897 = vadd.f32 0.0, %v2896
      %v2898 = vpop.f32.mrb[0].mxu0
      %2899 = vmatprep.mubr.bf16.mxu0 0
      %2900 = vmatmul.mubr.bf16.gmra.mrb[0].mxu0 %v2742
      %v2901 = vpop.f32.mrb[0].mxu0
      %v2902 = vadd.f32 0.0, %v2901
      %v2903 = vpop.f32.mrb[0].mxu0
      %v2904 = vpop.f32.mrb[0].mxu0
      %v2905 = vadd.f32 0.0, %v2904
      %v2906 = vpop.f32.mrb[0].mxu0
      %2907 = vdwg.mxu0
      %v2908 = vadd.f32 %v2696, %v2782
      %v2909 = vadd.f32 %v2697, %v2785
      %v2910 = vadd.f32 %v2698, %v2790
      %v2911 = vadd.f32 %v2699, %v2793
      %v2912 = vadd.f32 %v2700, %v2798
      %v2913 = vadd.f32 %v2701, %v2801
      %v2914 = vadd.f32 %v2702, %v2806
      %v2915 = vadd.f32 %v2703, %v2809
      %v2916 = vadd.f32 %v2704, %v2814
      %v2917 = vadd.f32 %v2705, %v2817
      %v2918 = vadd.f32 %v2706, %v2822
      %v2919 = vadd.f32 %v2707, %v2825
      %v2920 = vadd.f32 %v2708, %v2830
      %v2921 = vadd.f32 %v2709, %v2833
      %v2922 = vadd.f32 %v2710, %v2838
      %v2923 = vadd.f32 %v2711, %v2841
      %v2924 = vadd.f32 %v2712, %v2846
      %v2925 = vadd.f32 %v2713, %v2849
      %v2926 = vadd.f32 %v2714, %v2854
      %v2927 = vadd.f32 %v2715, %v2857
      %v2928 = vadd.f32 %v2716, %v2862
      %v2929 = vadd.f32 %v2717, %v2865
      %v2930 = vadd.f32 %v2718, %v2870
      %v2931 = vadd.f32 %v2719, %v2873
      %v2932 = vadd.f32 %v2720, %v2878
      %v2933 = vadd.f32 %v2721, %v2881
      %v2934 = vadd.f32 %v2722, %v2886
      %v2935 = vadd.f32 %v2723, %v2889
      %v2936 = vadd.f32 %v2724, %v2894
      %v2937 = vadd.f32 %v2725, %v2897
      %v2938 = vadd.f32 %v2726, %v2902
      %v2939 = vadd.f32 %v2727, %v2905
      %v2940 = vld [vmem:[%s214] sm:$0x1]
      %v2942 = vlaneseq
      %v2943 = vshrl.u32 %v2942, 7
      %v2944 = vsub.s32 0, %v2943
      %v2945 = vrot.slane %v2940, %v2944
      %v2947 = vadd.f32 %v2908, %v2945
      %v2948 = vadd.f32 %v2909, %v2945
      %v2949 = vadd.f32 %v2910, %v2945
      %v2950 = vadd.f32 %v2911, %v2945
      %v2951 = vadd.f32 %v2912, %v2945
      %v2952 = vadd.f32 %v2913, %v2945
      %v2953 = vadd.f32 %v2914, %v2945
      %v2954 = vadd.f32 %v2915, %v2945
      %v2955 = vadd.f32 %v2916, %v2945
      %v2956 = vadd.f32 %v2917, %v2945
      %v2957 = vadd.f32 %v2918, %v2945
      %v2958 = vadd.f32 %v2919, %v2945
      %v2959 = vadd.f32 %v2920, %v2945
      %v2960 = vadd.f32 %v2921, %v2945
      %v2961 = vadd.f32 %v2922, %v2945
      %v2962 = vadd.f32 %v2923, %v2945
      %v2963 = vadd.f32 %v2924, %v2945
      %v2964 = vadd.f32 %v2925, %v2945
      %v2965 = vadd.f32 %v2926, %v2945
      %v2966 = vadd.f32 %v2927, %v2945
      %v2967 = vadd.f32 %v2928, %v2945
      %v2968 = vadd.f32 %v2929, %v2945
      %v2969 = vadd.f32 %v2930, %v2945
      %v2970 = vadd.f32 %v2931, %v2945
      %v2971 = vadd.f32 %v2932, %v2945
      %v2972 = vadd.f32 %v2933, %v2945
      %v2973 = vadd.f32 %v2934, %v2945
      %v2974 = vadd.f32 %v2935, %v2945
      %v2975 = vadd.f32 %v2936, %v2945
      %v2976 = vadd.f32 %v2937, %v2945
      %v2977 = vadd.f32 %v2938, %v2945
      %v2978 = vadd.f32 %v2939, %v2945
      %v2979 = vmax.f32 %v2947, 0.0
      %v2980 = vmax.f32 %v2948, 0.0
      %v2981 = vmax.f32 %v2949, 0.0
      %v2982 = vmax.f32 %v2950, 0.0
      %v2983 = vmax.f32 %v2951, 0.0
      %v2984 = vmax.f32 %v2952, 0.0
      %v2985 = vmax.f32 %v2953, 0.0
      %v2986 = vmax.f32 %v2954, 0.0
      %v2987 = vmax.f32 %v2955, 0.0
      %v2988 = vmax.f32 %v2956, 0.0
      %v2989 = vmax.f32 %v2957, 0.0
      %v2990 = vmax.f32 %v2958, 0.0
      %v2991 = vmax.f32 %v2959, 0.0
      %v2992 = vmax.f32 %v2960, 0.0
      %v2993 = vmax.f32 %v2961, 0.0
      %v2994 = vmax.f32 %v2962, 0.0
      %v2995 = vmax.f32 %v2963, 0.0
      %v2996 = vmax.f32 %v2964, 0.0
      %v2997 = vmax.f32 %v2965, 0.0
      %v2998 = vmax.f32 %v2966, 0.0
      %v2999 = vmax.f32 %v2967, 0.0
      %v3000 = vmax.f32 %v2968, 0.0
      %v3001 = vmax.f32 %v2969, 0.0
      %v3002 = vmax.f32 %v2970, 0.0
      %v3003 = vmax.f32 %v2971, 0.0
      %v3004 = vmax.f32 %v2972, 0.0
      %v3005 = vmax.f32 %v2973, 0.0
      %v3006 = vmax.f32 %v2974, 0.0
      %v3007 = vmax.f32 %v2975, 0.0
      %v3008 = vmax.f32 %v2976, 0.0
      %v3009 = vmax.f32 %v2977, 0.0
      %v3010 = vmax.f32 %v2978, 0.0
      %3011 = vxpose.xlu0.b32.start [1/16] %v2979, 128
      %3012 = vxpose.xlu0.b32.cont [2/16] %v2980, 128
      %3013 = vxpose.xlu0.b32.cont [3/16] %v2981, 128
      %3014 = vxpose.xlu0.b32.cont [4/16] %v2982, 128
      %3015 = vxpose.xlu0.b32.cont [5/16] %v2983, 128
      %3016 = vxpose.xlu0.b32.cont [6/16] %v2984, 128
      %3017 = vxpose.xlu0.b32.cont [7/16] %v2985, 128
      %3018 = vxpose.xlu0.b32.cont [8/16] %v2986, 128
      %3019 = vxpose.xlu0.b32.cont [9/16] %v2987, 128
      %3020 = vxpose.xlu0.b32.cont [10/16] %v2988, 128
      %3021 = vxpose.xlu0.b32.cont [11/16] %v2989, 128
      %3022 = vxpose.xlu0.b32.cont [12/16] %v2990, 128
      %3023 = vxpose.xlu0.b32.cont [13/16] %v2991, 128
      %3024 = vxpose.xlu0.b32.cont [14/16] %v2992, 128
      %3025 = vxpose.xlu0.b32.cont [15/16] %v2993, 128
      %3026 = vxpose.xlu0.b32.end [16/16] %v2994, 128
      %v3027 = vpop.trf.xlu0
      %v3028 = vpop.trf.xlu0
      %v3029 = vpop.trf.xlu0
      %v3030 = vpop.trf.xlu0
      %v3031 = vpop.trf.xlu0
      %v3032 = vpop.trf.xlu0
      %v3033 = vpop.trf.xlu0
      %v3034 = vpop.trf.xlu0
      %v3035 = vpop.trf.xlu0
      %v3036 = vpop.trf.xlu0
      %v3037 = vpop.trf.xlu0
      %v3038 = vpop.trf.xlu0
      %v3039 = vpop.trf.xlu0
      %v3040 = vpop.trf.xlu0
      %v3041 = vpop.trf.xlu0
      %v3042 = vpop.trf.xlu0
      %3043 = vxpose.xlu0.b32.start [1/16] %v2995, 128
      %3044 = vxpose.xlu0.b32.cont [2/16] %v2996, 128
      %3045 = vxpose.xlu0.b32.cont [3/16] %v2997, 128
      %3046 = vxpose.xlu0.b32.cont [4/16] %v2998, 128
      %3047 = vxpose.xlu0.b32.cont [5/16] %v2999, 128
      %3048 = vxpose.xlu0.b32.cont [6/16] %v3000, 128
      %3049 = vxpose.xlu0.b32.cont [7/16] %v3001, 128
      %3050 = vxpose.xlu0.b32.cont [8/16] %v3002, 128
      %3051 = vxpose.xlu0.b32.cont [9/16] %v3003, 128
      %3052 = vxpose.xlu0.b32.cont [10/16] %v3004, 128
      %3053 = vxpose.xlu0.b32.cont [11/16] %v3005, 128
      %3054 = vxpose.xlu0.b32.cont [12/16] %v3006, 128
      %3055 = vxpose.xlu0.b32.cont [13/16] %v3007, 128
      %3056 = vxpose.xlu0.b32.cont [14/16] %v3008, 128
      %3057 = vxpose.xlu0.b32.cont [15/16] %v3009, 128
      %3058 = vxpose.xlu0.b32.end [16/16] %v3010, 128
      %v3059 = vpop.trf.xlu0
      %v3060 = vpop.trf.xlu0
      %v3061 = vpop.trf.xlu0
      %v3062 = vpop.trf.xlu0
      %v3063 = vpop.trf.xlu0
      %v3064 = vpop.trf.xlu0
      %v3065 = vpop.trf.xlu0
      %v3066 = vpop.trf.xlu0
      %v3067 = vpop.trf.xlu0
      %v3068 = vpop.trf.xlu0
      %v3069 = vpop.trf.xlu0
      %v3070 = vpop.trf.xlu0
      %v3071 = vpop.trf.xlu0
      %v3072 = vpop.trf.xlu0
      %v3073 = vpop.trf.xlu0
      %v3074 = vpop.trf.xlu0
      %3075 = vst [vmem:[%s223] sm:$0xff] %v3027
      %3076 = vst [vmem:[%s223 + $0x8] sm:$0xff] %v3059
      %p3077 = scmp.lt.s32.totalorder %s18, 1
      %s3078 = scalar_select %p3077, %s18, 1
      %p3079 = scmp.lt.s32.totalorder %s19, 0
      %s3080 = scalar_select %p3079, %s19, 0
      %s3081 = smul.addr %s3080, 2
      %s3082 = smul.addr %s3078, 2
      %s3083 = sadd.s32 %s3081, %s3082
      %s3084 = smul.addr %s3083, 8
      %s3085 = scalar_lea.vmem %s3, %s3084
      // Predicated region
      $region33: #{conv_bn_relu.1} parent=31 // pred_check
        %p3086 = pneg %p124
      $region34: #{conv_bn_relu.1} parent=31 // pred_check_branch
        %3088 = sbr.rel (%p3086) target = $region36
      $region35: #{conv_bn_relu.1} parent=31 // pred_region
        _
      $region36: #{conv_bn_relu.1} parent=31 // pred_fallthru
        _
    $region32: #{conv_bn_relu.1} parent=5 // pred_fallthru
      _
    %p3089 = scmp.le.s32.totalorder 2, %s9
    // Predicated region
    $region37: #{conv_bn_relu.1} parent=5 // pred_check
      %p3090 = pneg %p3089
    $region38: #{conv_bn_relu.1} parent=5 // pred_check_branch
      %3092 = sbr.rel (%p3090) target = $region40
    $region39: #{conv_bn_relu.1} parent=5 // pred_region
      %s3093 = ssub.s32 %s9, 2
      // Predicated region
      $region41: #{conv_bn_relu.1} parent=39 // pred_check
        %p3094 = pneg %p130
      $region42: #{conv_bn_relu.1} parent=39 // pred_check_branch
        %3096 = sbr.rel (%p3094) target = $region44
      $region43: #{conv_bn_relu.1} parent=39 // pred_region
        %p3097 = scmp.lt.s32.totalorder %s20, 1
        %s3098 = scalar_select %p3097, %s20, 1
        %p3099 = scmp.lt.s32.totalorder %s21, 0
        %s3100 = scalar_select %p3099, %s21, 0
        %s3101 = smul.addr %s3100, 2
        %s3102 = smul.addr %s3098, 2
        %s3103 = sadd.s32 %s3101, %s3102
        %s3104 = smul.addr %s3103, 8
        %s3105 = scalar_lea.vmem %s3, %s3104
      $region44: #{conv_bn_relu.1} parent=39 // pred_fallthru
        _
    $region40: #{conv_bn_relu.1} parent=5 // pred_fallthru
      _
  $region6: #{conv_bn_relu.1} parent=0 // loop_footer
    %s13 = sadd.s32 1, %s9
  $region7: #{conv_bn_relu.1} parent=0 // loop_footer_branch
    %8 = sbr.rel target = $region3
  $region8: #{conv_bn_relu.1} parent=0 // loop_exit
    _

</llo_original>
